<compile_context>
chip_gen: v7x
topology: tpu7x:2x2x1
jax: 0.10.0
libtpu: 0.0.40
codegen_flags: <defaults>
</compile_context>

<pallas_src>
import functools
import math

import jax
import jax.numpy as jnp
from jax.experimental import pallas as pl
from jax.experimental.pallas import tpu as pltpu

_BPAD = 16   # batch (sublane) padding: bf16 packs 16 sublanes per vreg


# --------------------------------------------------------------------------
# Sizing helpers
# --------------------------------------------------------------------------
def _chip_vmem_bytes():
    """Per-core VMEM capacity; conservative (v7x, 64 MiB) if the query fails."""
    try:
        return int(pltpu.get_tpu_info().vmem_capacity_bytes)
    except Exception:
        return 64 * 1024 * 1024


def _round_up(x, m):
    return ((x + m - 1) // m) * m


def _divisor_tile(dim, target, quantum=128):
    """Largest multiple of `quantum` dividing `dim` and <= target, else `dim`
    (a full-extent block is always a legal block shape)."""
    if dim % quantum != 0:
        return dim
    best = quantum
    c = quantum
    while c <= min(dim, target):
        if dim % c == 0:
            best = c
        c += quantum
    return best


def _batch_tile(Bp, cap=256):
    """Batch-row tile (Bp is a multiple of 16).  Prefer >=2 tiles so the
    leading 'parallel' axis can shard across v7x's two TensorCores."""
    Bm = max(Bp // 2, 8)
    while Bm > cap and Bm % 16 == 0:
        Bm //= 2
    return Bm


def _forward_tiles(Bp, D, Hd, budget):
    """(Bm, tk, thd) such that double-buffered blocks + scratch fit `budget`."""
    Bm = _batch_tile(Bp)
    while True:
        target = 2048
        while True:
            tk = _divisor_tile(D, target)
            thd = _divisor_tile(Hd, target)
            need = (2 * Bm * tk * 2        # x blocks (bf16)
                    + 2 * tk * thd * 2     # W1 blocks (bf16)
                    + 2 * Bm * thd * 4     # cond blocks (f32)
                    + 2 * thd * D * 2      # W2 blocks (bf16)
                    + 2 * D * 4            # b2 blocks (f32)
                    + 2 * Bm * D * 4       # output blocks (f32)
                    + Bm * thd * 4         # acc1 scratch
                    + Bm * D * 4)          # acc2 scratch
            if need <= budget or target <= 128:
                break
            target //= 2
        if (need <= budget or Bm <= 8 or (Bm // 2) % 8 != 0
                or Bp % (Bm // 2) != 0):
            return Bm, tk, thd
        Bm //= 2


# --------------------------------------------------------------------------
# Fused 2-layer forward kernel
# --------------------------------------------------------------------------
def _fused_mlp_kernel(x_ref, w1_ref, cond_ref, w2_ref, b2_ref, o_ref,
                      acc1_ref, acc2_ref):
    """grid = (m: batch tiles [parallel],
               j: hidden-column tiles == layer-2 contraction [arbitrary],
               k: layer-1 D-contraction tiles [arbitrary])."""
    j = pl.program_id(1)
    k = pl.program_id(2)

    @pl.when(k == 0)
    def _():
        acc1_ref[...] = jnp.zeros_like(acc1_ref)

    @pl.when(jnp.logical_and(j == 0, k == 0))
    def _():
        acc2_ref[...] = jnp.zeros_like(acc2_ref)

    acc1_ref[...] += jnp.dot(x_ref[...], w1_ref[...],
                             preferred_element_type=jnp.float32)

    @pl.when(k == pl.num_programs(2) - 1)
    def _():
        # finalize this hidden-column tile of h and fold it straight into the
        # layer-2 accumulator (no HBM round trip for h).
        h = jnp.maximum(acc1_ref[...] + cond_ref[...], 0.0).astype(jnp.bfloat16)
        acc2_ref[...] += jnp.dot(h, w2_ref[...],
                                 preferred_element_type=jnp.float32)

        @pl.when(j == pl.num_programs(1) - 1)
        def _():
            o_ref[...] = (acc2_ref[...] + b2_ref[...]).astype(o_ref.dtype)


def _velocity_flat(x_pad_bf16, cond, params):
    """Velocity on padded flat inputs: [Bp,D] bf16 + [Bp,Hd] cond -> [Bp,D] f32."""
    Bp, D = x_pad_bf16.shape
    Hd = cond.shape[1]
    chip_vmem = _chip_vmem_bytes()
    Bm, tk, thd = _forward_tiles(Bp, D, Hd, int(chip_vmem * 0.6))
    nm, nj, nk = Bp // Bm, Hd // thd, D // tk

    return pl.pallas_call(
        _fused_mlp_kernel,
        out_shape=jax.ShapeDtypeStruct((Bp, D), jnp.float32),
        grid_spec=pltpu.PrefetchScalarGridSpec(
            num_scalar_prefetch=0,
            grid=(nm, nj, nk),
            in_specs=[
                pl.BlockSpec((Bm, tk), lambda m, j, k: (m, k)),    # x    (bf16)
                pl.BlockSpec((tk, thd), lambda m, j, k: (k, j)),   # W1   (bf16)
                pl.BlockSpec((Bm, thd), lambda m, j, k: (m, j)),   # cond (f32)
                pl.BlockSpec((thd, D), lambda m, j, k: (j, 0)),    # W2   (bf16)
                pl.BlockSpec((1, D), lambda m, j, k: (0, 0)),      # b2   (f32)
            ],
            out_specs=pl.BlockSpec((Bm, D), lambda m, j, k: (m, 0)),
            scratch_shapes=[pltpu.VMEM((Bm, thd), jnp.float32),
                            pltpu.VMEM((Bm, D), jnp.float32)]),
        compiler_params=pltpu.CompilerParams(
            dimension_semantics=("parallel", "arbitrary", "arbitrary"),
            vmem_limit_bytes=int(chip_vmem * 0.75)),
    )(x_pad_bf16, params["w1"], cond, params["w2"], params["b2"])


def shortcut_forward(x_t, t, d, params):
    """ShortcutModel.forward: estimate causalized velocity from (x_t, t, d).

    x_t: [B, ...], t: [B], d: [B].  Returns velocity shaped like x_t.
    """
    B = x_t.shape[0]
    D = math.prod(x_t.shape[1:])
    Bp = _round_up(B, _BPAD)

    x_pad = jnp.pad(x_t.reshape(B, D).astype(jnp.float32),
                    ((0, Bp - B), (0, 0))).astype(jnp.bfloat16)
    t_col = jnp.pad(t.astype(jnp.float32), (0, Bp - B))[:, None]
    d_col = jnp.pad(d.astype(jnp.float32), (0, Bp - B))[:, None]
    # lane-aligned pre-broadcast conditioning tile [Bp, Hd] (tiny)
    cond = t_col * params["wt"] + d_col * params["wd"] + params["b1"]

    v = _velocity_flat(x_pad, cond, params)
    return v[:B].reshape(x_t.shape).astype(x_t.dtype)


def shortcut_velocity(x_t, t, params):
    """ShortcutModel.velocity: forward with d = zeros_like(t)."""
    return shortcut_forward(x_t, t, jnp.zeros_like(t), params)


# --------------------------------------------------------------------------
# Fused Euler shortcut sampler (ShortcutEulerSolver.solve_shortcut)
# --------------------------------------------------------------------------
def _sampler_kernel(x0_ref, w1_ref, cond_ref, w2_ref, b2_ref, traj_ref,
                    x_state, *, inv_steps):
    """One Euler step per inner grid iteration; weights stay VMEM-resident."""
    s = pl.program_id(1)

    @pl.when(s == 0)
    def _():
        x_state[...] = x0_ref[...]

    x_bf = x_state[...].astype(jnp.bfloat16)
    h = jnp.dot(x_bf, w1_ref[...], preferred_element_type=jnp.float32)
    h = jnp.maximum(h + cond_ref[...], 0.0).astype(jnp.bfloat16)
    v = jnp.dot(h, w2_ref[...], preferred_element_type=jnp.float32) + b2_ref[...]

    x_new = x_state[...] + v * inv_steps
    x_state[...] = x_new
    traj_ref[...] = x_new


def shortcut_sample(prior, params, steps=1):
    """ShortcutEulerSolver.solve_shortcut: Euler integration on [0, 1].

    Returns (x_final, [x_1, ..., x_steps]) like the PyTorch solver.
    """
    steps = int(steps)
    B = prior.shape[0]
    D = math.prod(prior.shape[1:])
    Hd = params["w1"].shape[1]
    Bp = _round_up(B, _BPAD)
    chip_vmem = _chip_vmem_bytes()

    x0 = jnp.pad(prior.reshape(B, D).astype(jnp.float32), ((0, Bp - B), (0, 0)))
    # per-step conditioning rows: cond[s] = (s/steps)*wt + (1/steps)*wd + b1
    t_col = (jnp.arange(steps, dtype=jnp.float32) / steps)[:, None]
    cond_steps = (t_col * params["wt"] + (1.0 / steps) * params["wd"]
                  + params["b1"])                            # [steps, Hd] f32

    Bm = _batch_tile(Bp)
    nm = Bp // Bm

    def _attempt(weight_bufs):
        """Try the fused sampler with weights held in `weight_bufs` buffers."""
        need = (weight_bufs * (D * Hd * 2 + Hd * D * 2 + D * 4)   # W1, W2, b2
                + 2 * (Bm * D * 4 + Hd * 4 + Bm * D * 4)          # x0, cond, out
                + Bm * D * 4)                                     # x_state
        if need > int(chip_vmem * 0.6):
            return None
        try:
            if weight_bufs == 1:
                const_spec = lambda shape: pl.BlockSpec(
                    shape, lambda m, s: (0, 0), pipeline_mode=pl.Buffered(1))
            else:
                const_spec = lambda shape: pl.BlockSpec(
                    shape, lambda m, s: (0, 0))
            traj = pl.pallas_call(
                functools.partial(_sampler_kernel, inv_steps=1.0 / steps),
                out_shape=jax.ShapeDtypeStruct((steps, Bp, D), jnp.float32),
                grid_spec=pltpu.PrefetchScalarGridSpec(
                    num_scalar_prefetch=0,
                    grid=(nm, steps),
                    in_specs=[
                        pl.BlockSpec((Bm, D), lambda m, s: (m, 0)),    # x0
                        const_spec((D, Hd)),                           # W1
                        pl.BlockSpec((1, Hd), lambda m, s: (s, 0)),    # cond(s)
                        const_spec((Hd, D)),                           # W2
                        const_spec((1, D)),                            # b2
                    ],
                    out_specs=pl.BlockSpec((None, Bm, D),
                                           lambda m, s: (s, m, 0)),
                    scratch_shapes=[pltpu.VMEM((Bm, D), jnp.float32)]),
                compiler_params=pltpu.CompilerParams(
                    dimension_semantics=("parallel", "arbitrary"),
                    vmem_limit_bytes=int(chip_vmem * 0.75)),
            )(x0, params["w1"], cond_steps, params["w2"], params["b2"])
            return jax.block_until_ready(traj)
        except Exception:
            return None

    traj = _attempt(1)       # Buffered(1) weights: halves resident VMEM
    if traj is None:
        traj = _attempt(2)   # plain double-buffered weights
    if traj is not None:
        x_ts = [traj[i, :B].reshape(prior.shape).astype(prior.dtype)
                for i in range(steps)]
        return x_ts[-1], x_ts

    # Fallback: per-step fused forward (weights re-streamed each step).
    x_t, x_ts = prior, []
    for i in range(steps):
        ti = jnp.full((B,), i / steps, dtype=jnp.float32)
        di = jnp.full((B,), 1.0 / steps, dtype=jnp.float32)
        x_t = x_t + shortcut_forward(x_t, ti, di, params) / steps
        x_ts.append(x_t)
    return x_t, x_ts


# --------------------------------------------------------------------------
# Parameters & demo
# --------------------------------------------------------------------------
def init_params(key, D, Hd):
    """Deterministic synthetic parameters for the inner velocity estimator."""
    k1, k2, k3, k4 = jax.random.split(key, 4)
    s1 = 1.0 / jnp.sqrt(jnp.float32(D))
    s2 = 1.0 / jnp.sqrt(jnp.float32(Hd))
    return {
        "w1": (jax.random.normal(k1, (D, Hd), jnp.float32) * s1
               ).astype(jnp.bfloat16),
        "wt": jax.random.normal(k2, (1, Hd), jnp.float32) * 0.1,
        "wd": jax.random.normal(k3, (1, Hd), jnp.float32) * 0.1,
        "b1": jnp.zeros((1, Hd), jnp.float32),
        "w2": (jax.random.normal(k4, (Hd, D), jnp.float32) * s2
               ).astype(jnp.bfloat16),
        "b2": jnp.zeros((1, D), jnp.float32),
    }


if __name__ == "__main__":
    key = jax.random.PRNGKey(0)
    kx, kp = jax.random.split(key)

    B, C, H, W = 2, 4, 16, 16
    D, Hd = C * H * W, 256

    x_t = jax.random.normal(kx, (B, C, H, W), jnp.float32)
    t = jnp.full((B,), 0.25, dtype=jnp.float32)
    d = jnp.full((B,), 1.0 / 128.0, dtype=jnp.float32)
    params = init_params(kp, D, Hd)

    # forward(x_t, t, d)
    v = jax.block_until_ready(shortcut_forward(x_t, t, d, params))
    assert v.shape == x_t.shape and v.dtype == x_t.dtype

    # Pure-JAX reference with identical bf16 operand rounding / f32 accumulate.
    def ref_forward(x, tt, dd, p):
        xf = x.reshape(x.shape[0], -1).astype(jnp.bfloat16)
        h = jnp.dot(xf, p["w1"], preferred_element_type=jnp.float32)
        h = h + tt[:, None] * p["wt"] + dd[:, None] * p["wd"] + p["b1"]
        h = jnp.maximum(h, 0.0).astype(jnp.bfloat16)
        out = jnp.dot(h, p["w2"], preferred_element_type=jnp.float32) + p["b2"]
        return out.reshape(x.shape)

    ref = ref_forward(x_t, t, d, params)
    assert jnp.allclose(v, ref, atol=1e-2, rtol=1e-2), (
        float(jnp.max(jnp.abs(v - ref))))

    # velocity(x_t, t) = forward(x_t, t, 0)
    vel = jax.block_until_ready(shortcut_velocity(x_t, t, params))
    vel_ref = ref_forward(x_t, t, jnp.zeros_like(t), params)
    assert jnp.allclose(vel, vel_ref, atol=1e-2, rtol=1e-2)

    # Euler shortcut sampling (weights loaded once for all steps when fused).
    steps = 2
    x_out, traj = shortcut_sample(x_t, params, steps=steps)
    x_out = jax.block_until_ready(x_out)
    assert x_out.shape == x_t.shape and len(traj) == steps

    x_ref = x_t
    for i in range(steps):
        ti = jnp.full((B,), i / steps, dtype=jnp.float32)
        di = jnp.full((B,), 1.0 / steps, dtype=jnp.float32)
        x_ref = x_ref + ref_forward(x_ref, ti, di, params) / steps
    assert jnp.allclose(x_out, x_ref, atol=2e-2, rtol=2e-2), (
        float(jnp.max(jnp.abs(x_out - x_ref))))

    print("KERNEL_OK")
</pallas_src>

<mosaic_0001>
module attributes {stable_mosaic.version = 11 : i64} {
  func.func @_fused_mlp_kernel(%arg0: i32, %arg1: i32, %arg2: i32, %arg3: memref<8x1024xbf16, #tpu.memory_space<vmem>>, %arg4: memref<1024x256xbf16, #tpu.memory_space<vmem>>, %arg5: memref<8x256xf32, #tpu.memory_space<vmem>>, %arg6: memref<256x1024xbf16, #tpu.memory_space<vmem>>, %arg7: memref<1x1024xf32, #tpu.memory_space<vmem>>, %arg8: memref<8x1024xf32, #tpu.memory_space<vmem>>, %arg9: memref<8x256xf32, #tpu.memory_space<vmem>>, %arg10: memref<8x1024xf32, #tpu.memory_space<vmem>>) attributes {dimension_semantics = [#tpu.dimension_semantics<parallel>, #tpu.dimension_semantics<arbitrary>, #tpu.dimension_semantics<arbitrary>], iteration_bounds = array<i64: 2, 1, 1>, scalar_prefetch = 0 : i64, scratch_operands = 2 : i64, tpu.core_type = #tpu.core_type<tc>, window_params = [{transform_indices = @transform_0, window_bounds = array<i64: 8, 1024>}, {transform_indices = @transform_1, window_bounds = array<i64: 1024, 256>}, {transform_indices = @transform_2, window_bounds = array<i64: 8, 256>}, {transform_indices = @transform_3, window_bounds = array<i64: 256, 1024>}, {pipeline_mode = #tpu.pipeline_mode<synchronous>, transform_indices = @transform_4, window_bounds = array<i64: 1, 1024>}, {transform_indices = @transform_5, window_bounds = array<i64: 8, 1024>}]} {
    %c0_i32 = arith.constant 0 : i32
    %0 = arith.cmpi eq, %arg2, %c0_i32 : i32
    %1 = arith.extui %0 : i1 to i32
    %c0_i32_0 = arith.constant 0 : i32
    %2 = arith.cmpi ne, %1, %c0_i32_0 : i32
    scf.if %2 {
      %cst_13 = arith.constant 0.000000e+00 : f32
      %17 = vector.broadcast %cst_13 : f32 to vector<8x256xf32>
      %c0_14 = arith.constant 0 : index
      %c0_15 = arith.constant 0 : index
      %18 = vector.load %arg9[%c0_14, %c0_15] : memref<8x256xf32, #tpu.memory_space<vmem>>, vector<8x256xf32>
      tpu.vector_store %arg9[%c0_14, %c0_15], %17 {strides = array<i32>} : memref<8x256xf32, #tpu.memory_space<vmem>>, vector<8x256xf32>,
    } else {
    }
    %c0_i32_1 = arith.constant 0 : i32
    %3 = arith.cmpi eq, %arg1, %c0_i32_1 : i32
    %c0_i32_2 = arith.constant 0 : i32
    %4 = arith.cmpi eq, %arg2, %c0_i32_2 : i32
    %5 = arith.andi %3, %4 : i1
    %6 = arith.extui %5 : i1 to i32
    %c0_i32_3 = arith.constant 0 : i32
    %7 = arith.cmpi ne, %6, %c0_i32_3 : i32
    scf.if %7 {
      %cst_13 = arith.constant 0.000000e+00 : f32
      %17 = vector.broadcast %cst_13 : f32 to vector<8x1024xf32>
      %c0_14 = arith.constant 0 : index
      %c0_15 = arith.constant 0 : index
      %18 = vector.load %arg10[%c0_14, %c0_15] : memref<8x1024xf32, #tpu.memory_space<vmem>>, vector<8x1024xf32>
      tpu.vector_store %arg10[%c0_14, %c0_15], %17 {strides = array<i32>} : memref<8x1024xf32, #tpu.memory_space<vmem>>, vector<8x1024xf32>,
    } else {
    }
    %c0 = arith.constant 0 : index
    %c0_4 = arith.constant 0 : index
    %8 = vector.load %arg9[%c0, %c0_4] : memref<8x256xf32, #tpu.memory_space<vmem>>, vector<8x256xf32>
    %c0_5 = arith.constant 0 : index
    %c0_6 = arith.constant 0 : index
    %9 = vector.load %arg3[%c0_5, %c0_6] : memref<8x1024xbf16, #tpu.memory_space<vmem>>, vector<8x1024xbf16>
    %c0_7 = arith.constant 0 : index
    %c0_8 = arith.constant 0 : index
    %10 = vector.load %arg4[%c0_7, %c0_8] : memref<1024x256xbf16, #tpu.memory_space<vmem>>, vector<1024x256xbf16>
    %cst = arith.constant dense<0.000000e+00> : vector<8x256xf32>
    %11 = tpu.matmul %9, %10, %cst {dimension_numbers = #tpu.dot_dimension_numbers<[1], [0], [0], [1], [0, 0, 1, 1], [], []>} : vector<8x1024xbf16>, vector<1024x256xbf16>, vector<8x256xf32> -> vector<8x256xf32>
    %12 = arith.addf %8, %11 : vector<8x256xf32>
    %c0_9 = arith.constant 0 : index
    %c0_10 = arith.constant 0 : index
    %13 = vector.load %arg9[%c0_9, %c0_10] : memref<8x256xf32, #tpu.memory_space<vmem>>, vector<8x256xf32>
    tpu.vector_store %arg9[%c0_9, %c0_10], %12 {strides = array<i32>} : memref<8x256xf32, #tpu.memory_space<vmem>>, vector<8x256xf32>,
    %c0_i32_11 = arith.constant 0 : i32
    %14 = arith.cmpi eq, %arg2, %c0_i32_11 : i32
    %15 = arith.extui %14 : i1 to i32
    %c0_i32_12 = arith.constant 0 : i32
    %16 = arith.cmpi ne, %15, %c0_i32_12 : i32
    scf.if %16 {
      %c0_13 = arith.constant 0 : index
      %c0_14 = arith.constant 0 : index
      %17 = vector.load %arg9[%c0_13, %c0_14] : memref<8x256xf32, #tpu.memory_space<vmem>>, vector<8x256xf32>
      %c0_15 = arith.constant 0 : index
      %c0_16 = arith.constant 0 : index
      %18 = vector.load %arg5[%c0_15, %c0_16] : memref<8x256xf32, #tpu.memory_space<vmem>>, vector<8x256xf32>
      %19 = arith.addf %17, %18 : vector<8x256xf32>
      %cst_17 = arith.constant 0.000000e+00 : f32
      %20 = vector.broadcast %cst_17 : f32 to vector<8x256xf32>
      %21 = arith.maximumf %19, %20 : vector<8x256xf32>
      %22 = arith.truncf %21 : vector<8x256xf32> to vector<8x256xbf16>
      %c0_18 = arith.constant 0 : index
      %c0_19 = arith.constant 0 : index
      %23 = vector.load %arg10[%c0_18, %c0_19] : memref<8x1024xf32, #tpu.memory_space<vmem>>, vector<8x1024xf32>
      %c0_20 = arith.constant 0 : index
      %c0_21 = arith.constant 0 : index
      %24 = vector.load %arg6[%c0_20, %c0_21] : memref<256x1024xbf16, #tpu.memory_space<vmem>>, vector<256x1024xbf16>
      %cst_22 = arith.constant dense<0.000000e+00> : vector<8x1024xf32>
      %25 = tpu.matmul %22, %24, %cst_22 {dimension_numbers = #tpu.dot_dimension_numbers<[1], [0], [0], [1], [0, 0, 1, 1], [], []>} : vector<8x256xbf16>, vector<256x1024xbf16>, vector<8x1024xf32> -> vector<8x1024xf32>
      %26 = arith.addf %23, %25 : vector<8x1024xf32>
      %c0_23 = arith.constant 0 : index
      %c0_24 = arith.constant 0 : index
      %27 = vector.load %arg10[%c0_23, %c0_24] : memref<8x1024xf32, #tpu.memory_space<vmem>>, vector<8x1024xf32>
      tpu.vector_store %arg10[%c0_23, %c0_24], %26 {strides = array<i32>} : memref<8x1024xf32, #tpu.memory_space<vmem>>, vector<8x1024xf32>,
      %c0_i32_25 = arith.constant 0 : i32
      %28 = arith.cmpi eq, %arg1, %c0_i32_25 : i32
      %29 = arith.extui %28 : i1 to i32
      %c0_i32_26 = arith.constant 0 : i32
      %30 = arith.cmpi ne, %29, %c0_i32_26 : i32
      scf.if %30 {
        %c0_27 = arith.constant 0 : index
        %c0_28 = arith.constant 0 : index
        %31 = vector.load %arg10[%c0_27, %c0_28] : memref<8x1024xf32, #tpu.memory_space<vmem>>, vector<8x1024xf32>
        %c0_29 = arith.constant 0 : index
        %c0_30 = arith.constant 0 : index
        %32 = vector.load %arg7[%c0_29, %c0_30] : memref<1x1024xf32, #tpu.memory_space<vmem>>, vector<1x1024xf32>
        %33 = vector.broadcast %32 : vector<1x1024xf32> to vector<8x1024xf32>
        %34 = arith.addf %31, %33 : vector<8x1024xf32>
        %c0_31 = arith.constant 0 : index
        %c0_32 = arith.constant 0 : index
        %35 = vector.load %arg8[%c0_31, %c0_32] : memref<8x1024xf32, #tpu.memory_space<vmem>>, vector<8x1024xf32>
        tpu.vector_store %arg8[%c0_31, %c0_32], %34 {strides = array<i32>} : memref<8x1024xf32, #tpu.memory_space<vmem>>, vector<8x1024xf32>,
      } else {
      }
    } else {
    }
    return
  }
  func.func @transform_0(%arg0: i32, %arg1: i32, %arg2: i32) -> (i32, i32) {
    %c0_i32 = arith.constant 0 : i32
    return %arg0, %arg2 : i32, i32
  }
  func.func @transform_1(%arg0: i32, %arg1: i32, %arg2: i32) -> (i32, i32) {
    %c0_i32 = arith.constant 0 : i32
    return %arg2, %arg1 : i32, i32
  }
  func.func @transform_2(%arg0: i32, %arg1: i32, %arg2: i32) -> (i32, i32) {
    %c0_i32 = arith.constant 0 : i32
    return %arg0, %arg1 : i32, i32
  }
  func.func @transform_3(%arg0: i32, %arg1: i32, %arg2: i32) -> (i32, i32) {
    %c0_i32 = arith.constant 0 : i32
    %c0_i32_0 = arith.constant 0 : i32
    return %arg1, %c0_i32 : i32, i32
  }
  func.func @transform_4(%arg0: i32, %arg1: i32, %arg2: i32) -> (i32, i32) {
    %c0_i32 = arith.constant 0 : i32
    %c0_i32_0 = arith.constant 0 : i32
    %c0_i32_1 = arith.constant 0 : i32
    return %c0_i32, %c0_i32_0 : i32, i32
  }
  func.func @transform_5(%arg0: i32, %arg1: i32, %arg2: i32) -> (i32, i32) {
    %c0_i32 = arith.constant 0 : i32
    %c0_i32_0 = arith.constant 0 : i32
    return %arg0, %c0_i32 : i32, i32
  }
}

</mosaic_0001>

<llo_original>
// kernel: tpu_custom_call.1
$region0: #{tpu_custom_call.1}
  #allocation0 [shape = 'u32[]', space=smem, size = 0x4, offset = 0x4, fixed_abs, tag = 'smem constant byte address 0x4 - core index']
  #allocation1 [shape = 'u32[144,128]{1,0:T(1,128)}', space=vmem, size = 0x12000, scoped, tag = 'internal scratch']
  #allocation2 [shape = 'f32[8,256]{1,0:T(8,128)}', space=vmem, size = 0x2000, scoped, tag = 'scratch operand']
  #allocation3 [shape = 'f32[8,1024]{1,0:T(8,128)}', space=vmem, size = 0x8000, scoped, tag = 'scratch operand']
  %s0 = inlined_call_operand.hbm [shape: bf16[16,1024], index: 0, kind: input, shape index: {}]
  %s1 = inlined_call_operand.hbm [shape: bf16[1024,256], index: 1, kind: input, shape index: {}]
  %s2 = inlined_call_operand.hbm [shape: f32[16,256], index: 2, kind: input, shape index: {}]
  %s3 = inlined_call_operand.hbm [shape: bf16[256,1024], index: 3, kind: input, shape index: {}]
  %s4 = inlined_call_operand.vmem [shape: f32[1,1024], index: 4, kind: input, shape index: {}]
  %s5 = inlined_call_operand.hbm [shape: f32[16,1024], index: 5, kind: output, shape index: {}]
  %s6 = sld [smem:[#allocation0]]
  $region85: #{tpu_custom_call.1} parent=0
    _
  %s8 = ssub.s32 1, %s6
  %s9 = scalar_select 0, %s8, %s6
  $region1: #{tpu_custom_call.1} parent=0
    #allocation4 [shape = 'u8[32768]{0}', space=vmem, size = 0x8000, scoped, tag = 'input window, operand 0']
    #allocation5 [shape = 's32[2]{0}', space=sflag, size = 0x8, scoped, tag = 'scoped memory for tpu_custom_call.1']
    #allocation6 [shape = 's32[2]{0}', space=sflag, size = 0x8, scoped, tag = 'scoped memory for tpu_custom_call.1']
    #allocation7 [shape = 'u8[524288]{0}', space=vmem, size = 0x80000, scoped, tag = 'input window, operand 1, single buffered']
    #allocation8 [shape = 's32[1]{0}', space=sflag, size = 0x4, scoped, tag = 'scoped memory for tpu_custom_call.1']
    #allocation9 [shape = 'u8[16384]{0}', space=vmem, size = 0x4000, scoped, tag = 'input window, operand 2']
    #allocation10 [shape = 'u8[524288]{0}', space=vmem, size = 0x80000, scoped, tag = 'input window, operand 3, single buffered']
    #allocation11 [shape = 'u8[65536]{0}', space=vmem, size = 0x10000, scoped, tag = 'output window, operand 0']
    %10 = vsyncpa [#allocation5], 0
    %s11 = scalar_lea.sflag [#allocation5], 1
    %12 = vsyncpa %s11, 0
    %13 = vsyncpa [#allocation8], 0
    %14 = vsyncpa [#allocation6], 0
    %s15 = scalar_lea.sflag [#allocation6], 1
    %16 = vsyncpa %s15, 0
    loop: start=0, step=1, limit=4
    $region2: #{tpu_custom_call.1} parent=1 // loop_pre_header
      _
    $region3: #{tpu_custom_call.1} parent=1 // loop_header
      %s18 = sphi 0, %s22
      %p19 = scmp.ge.s32.totalorder %s18, 4
      %s25 = sphi 0, %s44
      %s26 = sphi 0, %s40
      %s27 = sphi 0, %s36
      %s28 = sphi 0, %s25
      %s29 = sphi 0, %s26
      %s30 = sphi 0, %s27
      %s31 = sphi 0, %s28
      %s32 = sphi 0, %s29
      %s33 = sphi 0, %s30
      %s49 = sphi 0, %s51
      %s52 = sphi 0, %s49
      %s53 = sphi 0, %s52
      %s69 = sphi 0, %s53
      %s77 = sphi 0, %s79
      %s80 = sphi 0, %s77
      %s81 = sphi 0, %s80
      %s97 = sphi 0, %s81
      %s105 = sphi 0, %s107
      %s108 = sphi 0, %s105
      %s109 = sphi 0, %s108
      %s125 = sphi 0, %s109
      %s131 = sphi 0, %s133
      %s134 = sphi 0, %s131
      %s135 = sphi 0, %s134
      %s151 = sphi 0, %s135
      %s155 = sphi 0, %s155
      %s157 = sphi 0, %s155
      %s158 = sphi 0, %s157
      %s172 = sphi 0, %s158
      %s178 = sphi 0, %s180
      %s181 = sphi 0, %s178
      %s182 = sphi 0, %s181
      %s198 = sphi 0, %s182
    $region4: #{tpu_custom_call.1} parent=1 // loop_header_branch
      %21 = sbr.rel (%p19) target = $region8
    $region5: #{tpu_custom_call.1} parent=1 // loop_body
      %s23 = ssub.s32 %s18, 1
      %s24 = ssub.s32 %s18, 2
      %s34 = sadd.s32 1, %s27
      %p35 = scmp.ge.s32.totalorder %s34, 1
      %s36 = scalar_select %p35, 0, %s34
      %s37 = sadd.s32 1, %s26
      %s38 = scalar_select %p35, %s37, %s26
      %p39 = scmp.ge.s32.totalorder %s38, 1
      %s40 = scalar_select %p39, 0, %s38
      %s41 = sadd.s32 1, %s25
      %s42 = scalar_select %p39, %s41, %s25
      %p43 = scmp.ge.s32.totalorder %s42, 2
      %s44 = scalar_select %p43, 0, %s42
      %s45 = ssub.s32 %s25, %s44
      %s46 = ssub.s32 %s27, %s36
      %s47 = sor.u32 %s45, %s46
      %p48 = scmp.eq.s32.totalorder %s47, 0
      %s50 = sadd.s32 %s49, 1
      %s51 = scalar_select %p48, %s49, %s50
      %p54 = pneg %p48
      %p55 = scmp.eq.s32.totalorder %s18, 1
      %p56 = por %p54, %p55
      %p57 = scmp.ne.s32.totalorder %s49, %s52
      %p58 = scmp.eq.s32.totalorder %s18, 0
      %p59 = por %p57, %p58
      %p60 = scmp.ne.s32.totalorder %s49, %s52
      %p61 = scmp.eq.s32.totalorder %s23, 1
      %p62 = por %p60, %p61
      %p63 = scmp.ne.s32.totalorder %s52, %s53
      %p64 = scmp.eq.s32.totalorder %s23, 0
      %p65 = por %p63, %p64
      %p66 = scmp.ne.s32.totalorder %s52, %s53
      %p67 = scmp.eq.s32.totalorder %s24, 1
      %p68 = por %p66, %p67
      %p70 = scmp.ne.s32.totalorder %s53, %s69
      %p71 = scmp.eq.s32.totalorder %s24, 0
      %p72 = por %p70, %p71
      %s73 = ssub.s32 %s27, %s36
      %s74 = ssub.s32 %s26, %s40
      %s75 = sor.u32 %s73, %s74
      %p76 = scmp.eq.s32.totalorder %s75, 0
      %s78 = sadd.s32 %s77, 1
      %s79 = scalar_select %p76, %s77, %s78
      %p82 = pneg %p76
      %p83 = scmp.eq.s32.totalorder %s18, 1
      %p84 = por %p82, %p83
      %p85 = scmp.ne.s32.totalorder %s77, %s80
      %p86 = scmp.eq.s32.totalorder %s18, 0
      %p87 = por %p85, %p86
      %p88 = scmp.ne.s32.totalorder %s77, %s80
      %p89 = scmp.eq.s32.totalorder %s23, 1
      %p90 = por %p88, %p89
      %p91 = scmp.ne.s32.totalorder %s80, %s81
      %p92 = scmp.eq.s32.totalorder %s23, 0
      %p93 = por %p91, %p92
      %p94 = scmp.ne.s32.totalorder %s80, %s81
      %p95 = scmp.eq.s32.totalorder %s24, 1
      %p96 = por %p94, %p95
      %p98 = scmp.ne.s32.totalorder %s81, %s97
      %p99 = scmp.eq.s32.totalorder %s24, 0
      %p100 = por %p98, %p99
      %s101 = ssub.s32 %s25, %s44
      %s102 = ssub.s32 %s26, %s40
      %s103 = sor.u32 %s101, %s102
      %p104 = scmp.eq.s32.totalorder %s103, 0
      %s106 = sadd.s32 %s105, 1
      %s107 = scalar_select %p104, %s105, %s106
      %p110 = pneg %p104
      %p111 = scmp.eq.s32.totalorder %s18, 1
      %p112 = por %p110, %p111
      %p113 = scmp.ne.s32.totalorder %s105, %s108
      %p114 = scmp.eq.s32.totalorder %s18, 0
      %p115 = por %p113, %p114
      %p116 = scmp.ne.s32.totalorder %s105, %s108
      %p117 = scmp.eq.s32.totalorder %s23, 1
      %p118 = por %p116, %p117
      %p119 = scmp.ne.s32.totalorder %s108, %s109
      %p120 = scmp.eq.s32.totalorder %s23, 0
      %p121 = por %p119, %p120
      %p122 = scmp.ne.s32.totalorder %s108, %s109
      %p123 = scmp.eq.s32.totalorder %s24, 1
      %p124 = por %p122, %p123
      %p126 = scmp.ne.s32.totalorder %s109, %s125
      %p127 = scmp.eq.s32.totalorder %s24, 0
      %p128 = por %p126, %p127
      %s129 = ssub.s32 %s26, %s40
      %p130 = scmp.eq.s32.totalorder %s129, 0
      %s132 = sadd.s32 %s131, 1
      %s133 = scalar_select %p130, %s131, %s132
      %p136 = pneg %p130
      %p137 = scmp.eq.s32.totalorder %s18, 1
      %p138 = por %p136, %p137
      %p139 = scmp.ne.s32.totalorder %s131, %s134
      %p140 = scmp.eq.s32.totalorder %s18, 0
      %p141 = por %p139, %p140
      %p142 = scmp.ne.s32.totalorder %s131, %s134
      %p143 = scmp.eq.s32.totalorder %s23, 1
      %p144 = por %p142, %p143
      %p145 = scmp.ne.s32.totalorder %s134, %s135
      %p146 = scmp.eq.s32.totalorder %s23, 0
      %p147 = por %p145, %p146
      %p148 = scmp.ne.s32.totalorder %s134, %s135
      %p149 = scmp.eq.s32.totalorder %s24, 1
      %p150 = por %p148, %p149
      %p152 = scmp.ne.s32.totalorder %s135, %s151
      %p153 = scmp.eq.s32.totalorder %s24, 0
      %p154 = por %p152, %p153
      %s156 = sadd.s32 %s155, 1
      %p159 = scmp.eq.s32.totalorder %s18, 1
      %p160 = scmp.ne.s32.totalorder %s155, %s157
      %p161 = scmp.eq.s32.totalorder %s18, 0
      %p162 = por %p160, %p161
      %p163 = scmp.ne.s32.totalorder %s155, %s157
      %p164 = scmp.eq.s32.totalorder %s23, 1
      %p165 = por %p163, %p164
      %p166 = scmp.ne.s32.totalorder %s157, %s158
      %p167 = scmp.eq.s32.totalorder %s23, 0
      %p168 = por %p166, %p167
      %p169 = scmp.ne.s32.totalorder %s157, %s158
      %p170 = scmp.eq.s32.totalorder %s24, 1
      %p171 = por %p169, %p170
      %p173 = scmp.ne.s32.totalorder %s158, %s172
      %p174 = scmp.eq.s32.totalorder %s24, 0
      %p175 = por %p173, %p174
      %s176 = ssub.s32 %s25, %s44
      %p177 = scmp.eq.s32.totalorder %s176, 0
      %s179 = sadd.s32 %s178, 1
      %s180 = scalar_select %p177, %s178, %s179
      %p183 = pneg %p177
      %p184 = scmp.eq.s32.totalorder %s18, 1
      %p185 = por %p183, %p184
      %p186 = scmp.ne.s32.totalorder %s178, %s181
      %p187 = scmp.eq.s32.totalorder %s18, 0
      %p188 = por %p186, %p187
      %p189 = scmp.ne.s32.totalorder %s178, %s181
      %p190 = scmp.eq.s32.totalorder %s23, 1
      %p191 = por %p189, %p190
      %p192 = scmp.ne.s32.totalorder %s181, %s182
      %p193 = scmp.eq.s32.totalorder %s23, 0
      %p194 = por %p192, %p193
      %p195 = scmp.ne.s32.totalorder %s181, %s182
      %p196 = scmp.eq.s32.totalorder %s24, 1
      %p197 = por %p195, %p196
      %p199 = scmp.ne.s32.totalorder %s182, %s198
      %p200 = scmp.eq.s32.totalorder %s24, 0
      %p201 = por %p199, %p200
      %p202 = scmp.le.s32.totalorder 1, %s18
      %p203 = scmp.lt.s32.totalorder %s18, 3
      %p204 = pnand %p202, %p203
      %p205 = pneg %p204
      // Predicated region
      $region9: #{tpu_custom_call.1} parent=5 // pred_check
        _
      $region10: #{tpu_custom_call.1} parent=5 // pred_check_branch
        %207 = sbr.rel (%p204) target = $region12
      $region11: #{tpu_custom_call.1} parent=5 // pred_region
        %s208 = ssub.s32 %s18, 1
        // Predicated region
        $region13: #{tpu_custom_call.1} parent=11 // pred_check
          %p209 = pneg %p93
        $region14: #{tpu_custom_call.1} parent=11 // pred_check_branch
          %211 = sbr.rel (%p209) target = $region16
        $region15: #{tpu_custom_call.1} parent=11 // pred_region
          %s212 = smul.u32 128, %s30
          %s213 = smul.u32 2, %s29
          %s215 = ssub.s32 16384, 16384
          %216 = vsyncadd [#allocation8], %s215
          %s217 = smul.addr %s212, 2
          %s218 = sadd.s32 %s213, %s217
          %s219 = smul.addr %s218, 64
          %s220 = scalar_lea.hbm %s1, %s219
          %s221 = sshll.u32 [#allocation7], 4
          %s222 = int_to_ptr.vmem [resolvable:$true] %s221
          %227 = dma.hbm_to_vmem [thread:$0]  %s220, 16384, %s222, [#allocation8], 128, 128, 8
        $region16: #{tpu_custom_call.1} parent=11 // pred_fallthru
          _
        // Predicated region
        $region17: #{tpu_custom_call.1} parent=11 // pred_check
          %p228 = pneg %p147
        $region18: #{tpu_custom_call.1} parent=11 // pred_check_branch
          %230 = sbr.rel (%p228) target = $region20
        $region19: #{tpu_custom_call.1} parent=11 // pred_region
          %s231 = smul.u32 32, %s29
          %s233 = ssub.s32 16384, 16384
          %234 = vsyncadd [#allocation8], %s233
          %s235 = smul.addr %s231, 8
          %s236 = smul.addr %s235, 64
          %s237 = scalar_lea.hbm %s3, %s236
          %s238 = sshll.u32 [#allocation10], 4
          %s239 = int_to_ptr.vmem [resolvable:$true] %s238
          %244 = dma.hbm_to_vmem [thread:$0]  %s237, 16384, %s239, [#allocation8], 512, 512, 32
        $region20: #{tpu_custom_call.1} parent=11 // pred_fallthru
          _
        // Predicated region
        $region21: #{tpu_custom_call.1} parent=11 // pred_check
          %p245 = pneg %p168
        $region22: #{tpu_custom_call.1} parent=11 // pred_check_branch
          %247 = sbr.rel (%p245) target = $region24
        $region23: #{tpu_custom_call.1} parent=11 // pred_region
          _
        $region24: #{tpu_custom_call.1} parent=11 // pred_fallthru
          _
      $region12: #{tpu_custom_call.1} parent=5 // pred_fallthru
        _
      %p248 = scmp.lt.s32.totalorder %s18, 2
      // Predicated region
      $region25: #{tpu_custom_call.1} parent=5 // pred_check
        %p249 = pneg %p248
      $region26: #{tpu_custom_call.1} parent=5 // pred_check_branch
        %251 = sbr.rel (%p249) target = $region28
      $region27: #{tpu_custom_call.1} parent=5 // pred_region
        // Predicated region
        $region29: #{tpu_custom_call.1} parent=27 // pred_check
          %p252 = pneg %p59
        $region30: #{tpu_custom_call.1} parent=27 // pred_check_branch
          %254 = sbr.rel (%p252) target = $region32
        $region31: #{tpu_custom_call.1} parent=27 // pred_region
          %s255 = sand.u32 %s18, 1
          %s256 = scalar_lea.sflag [#allocation5], %s255
          %s257 = sand.u32 %s49, 1
          %s258 = smul.addr %s257, 32
          %s259 = scalar_lea.vmem [#allocation4], %s258
          %s260 = smul.u32 8, %s27
          %s262 = ssub.s32 512, 512
          %263 = vsyncadd %s256, %s262
          %s264 = smul.addr %s25, 8
          %s265 = sadd.s32 %s260, %s264
          %s266 = smul.addr %s265, 64
          %s267 = scalar_lea.hbm %s0, %s266
          %s269 = sshll.u32 %s259, 4
          %s270 = int_to_ptr.vmem [resolvable:$true] %s269
          %272 = dma.hbm_to_vmem [thread:$0]  %s267, 512, %s270, %s256
        $region32: #{tpu_custom_call.1} parent=27 // pred_fallthru
          _
        // Predicated region
        $region33: #{tpu_custom_call.1} parent=27 // pred_check
          %p273 = pneg %p115
        $region34: #{tpu_custom_call.1} parent=27 // pred_check_branch
          %275 = sbr.rel (%p273) target = $region36
        $region35: #{tpu_custom_call.1} parent=27 // pred_region
          %s276 = sand.u32 %s18, 1
          %s277 = scalar_lea.sflag [#allocation5], %s276
          %s278 = sand.u32 %s105, 1
          %s279 = smul.addr %s278, 16
          %s280 = scalar_lea.vmem [#allocation9], %s279
          %s281 = smul.u32 2, %s26
          %s283 = ssub.s32 256, 256
          %284 = vsyncadd %s277, %s283
          %s285 = smul.addr %s25, 2
          %s286 = sadd.s32 %s281, %s285
          %s287 = smul.addr %s286, 128
          %s288 = scalar_lea.hbm %s2, %s287
          %s290 = sshll.u32 %s280, 4
          %s291 = int_to_ptr.vmem [resolvable:$true] %s290
          %293 = dma.hbm_to_vmem [thread:$0]  %s288, 256, %s291, %s277
        $region36: #{tpu_custom_call.1} parent=27 // pred_fallthru
          _
      $region28: #{tpu_custom_call.1} parent=5 // pred_fallthru
        _
      %p294 = scmp.le.s32.totalorder 1, %s18
      %p295 = scmp.lt.s32.totalorder %s18, 3
      %p296 = pnand %p294, %p295
      %p297 = pneg %p296
      // Predicated region
      $region37: #{tpu_custom_call.1} parent=5 // pred_check
        _
      $region38: #{tpu_custom_call.1} parent=5 // pred_check_branch
        %299 = sbr.rel (%p296) target = $region40
      $region39: #{tpu_custom_call.1} parent=5 // pred_region
        %s300 = ssub.s32 %s18, 1
        %s301 = sand.u32 %s23, 1
        %s302 = scalar_lea.sflag [#allocation5], %s301
        %s303 = sand.u32 %s52, 1
        %s304 = smul.addr %s303, 32
        %s305 = scalar_lea.vmem [#allocation4], %s304
        // Predicated region
        $region41: #{tpu_custom_call.1} parent=39 // pred_check
          %p306 = pneg %p65
        $region42: #{tpu_custom_call.1} parent=39 // pred_check_branch
          %308 = sbr.rel (%p306) target = $region44
        $region43: #{tpu_custom_call.1} parent=39 // pred_region
          %309 = dma.done %s302, 512
        $region44: #{tpu_custom_call.1} parent=39 // pred_fallthru
          _
        // Predicated region
        $region45: #{tpu_custom_call.1} parent=39 // pred_check
          %p310 = pneg %p93
        $region46: #{tpu_custom_call.1} parent=39 // pred_check_branch
          %312 = sbr.rel (%p310) target = $region48
        $region47: #{tpu_custom_call.1} parent=39 // pred_region
          %313 = dma.done [#allocation8], 16384
        $region48: #{tpu_custom_call.1} parent=39 // pred_fallthru
          _
        %s314 = sand.u32 %s23, 1
        %s315 = scalar_lea.sflag [#allocation5], %s314
        %s316 = sand.u32 %s108, 1
        %s317 = smul.addr %s316, 16
        %s318 = scalar_lea.vmem [#allocation9], %s317
        // Predicated region
        $region49: #{tpu_custom_call.1} parent=39 // pred_check
          %p319 = pneg %p121
        $region50: #{tpu_custom_call.1} parent=39 // pred_check_branch
          %321 = sbr.rel (%p319) target = $region52
        $region51: #{tpu_custom_call.1} parent=39 // pred_region
          %322 = dma.done %s315, 256
        $region52: #{tpu_custom_call.1} parent=39 // pred_fallthru
          _
        // Predicated region
        $region53: #{tpu_custom_call.1} parent=39 // pred_check
          %p323 = pneg %p147
        $region54: #{tpu_custom_call.1} parent=39 // pred_check_branch
          %325 = sbr.rel (%p323) target = $region56
        $region55: #{tpu_custom_call.1} parent=39 // pred_region
          %326 = dma.done [#allocation8], 16384
        $region56: #{tpu_custom_call.1} parent=39 // pred_fallthru
          _
        %s327 = sand.u32 %s23, 1
        %s328 = scalar_lea.sflag [#allocation5], %s327
        %s329 = sand.u32 %s52, 1
        %s330 = smul.addr %s329, 32
        %s331 = scalar_lea.vmem [#allocation4], %s330
        %p332 = pneg %p65
        %p333 = pneg %p62
        %p334 = pneg %p93
        %p335 = pneg %p90
        %s336 = sand.u32 %s23, 1
        %s337 = scalar_lea.sflag [#allocation5], %s336
        %s338 = sand.u32 %s108, 1
        %s339 = smul.addr %s338, 16
        %s340 = scalar_lea.vmem [#allocation9], %s339
        %p341 = pneg %p121
        %p342 = pneg %p118
        %p343 = pneg %p147
        %p344 = pneg %p144
        %p345 = pneg %p168
        %p346 = pneg %p165
        %p347 = pneg %p194
        %p348 = pneg %p191
        %s349 = sand.u32 %s181, 1
        %s350 = scalar_lea.sflag [#allocation6], %s349
        %s351 = sand.u32 %s181, 1
        %s352 = smul.addr %s351, 64
        %s353 = scalar_lea.vmem [#allocation11], %s352
        %s354 = smul.u32 8, %s30
        %s355 = smul.u32 128, %s30
        %s356 = smul.u32 2, %s29
        %s357 = smul.u32 2, %s29
        %s358 = smul.u32 32, %s29
        %p359 = scmp.eq.s32.totalorder %s30, 0
        // Predicated region
        $region57: #{tpu_custom_call.1} parent=39 // pred_check
          %p360 = pneg %p359
        $region58: #{tpu_custom_call.1} parent=39 // pred_check_branch
          %362 = sbr.rel (%p360) target = $region60
        $region59: #{tpu_custom_call.1} parent=39 // pred_region
          %363 = vst [vmem:[#allocation2] sm:$0xff] 0.0
          %364 = vst [vmem:[#allocation2 + $0x8] sm:$0xff] 0.0
        $region60: #{tpu_custom_call.1} parent=39 // pred_fallthru
          _
        %p365 = scmp.eq.s32.totalorder %s29, 0
        %p366 = pnand %p365, %p359
        %p367 = pneg %p366
        // Predicated region
        $region61: #{tpu_custom_call.1} parent=39 // pred_check
          _
        $region62: #{tpu_custom_call.1} parent=39 // pred_check_branch
          %369 = sbr.rel (%p366) target = $region64
        $region63: #{tpu_custom_call.1} parent=39 // pred_region
          %370 = vst [vmem:[#allocation3] sm:$0xff] 0.0
          %371 = vst [vmem:[#allocation3 + $0x8] sm:$0xff] 0.0
          %372 = vst [vmem:[#allocation3 + $0x10] sm:$0xff] 0.0
          %373 = vst [vmem:[#allocation3 + $0x18] sm:$0xff] 0.0
          %374 = vst [vmem:[#allocation3 + $0x20] sm:$0xff] 0.0
          %375 = vst [vmem:[#allocation3 + $0x28] sm:$0xff] 0.0
          %376 = vst [vmem:[#allocation3 + $0x30] sm:$0xff] 0.0
          %377 = vst [vmem:[#allocation3 + $0x38] sm:$0xff] 0.0
        $region64: #{tpu_custom_call.1} parent=39 // pred_fallthru
          _
        %v378 = vld [vmem:[#allocation2] sm:$0xff]
        %v379 = vld [vmem:[#allocation2 + $0x8] sm:$0xff]
        %v380 = vld [vmem:[%s305] sm:$0xff]
        %v381 = vld [vmem:[%s305 + $0x8] sm:$0xff]
        %v382 = vld [vmem:[%s305 + $0x10] sm:$0xff]
        %v383 = vld [vmem:[%s305 + $0x18] sm:$0xff]
        %v384 = vld [vmem:[#allocation7] sm:$0xff]
        %v385 = vld [vmem:[#allocation7 + $0x8] sm:$0xff]
        %v386 = vld [vmem:[#allocation7 + $0x10] sm:$0xff]
        %v387 = vld [vmem:[#allocation7 + $0x18] sm:$0xff]
        %v388 = vld [vmem:[#allocation7 + $0x20] sm:$0xff]
        %v389 = vld [vmem:[#allocation7 + $0x28] sm:$0xff]
        %v390 = vld [vmem:[#allocation7 + $0x30] sm:$0xff]
        %v391 = vld [vmem:[#allocation7 + $0x38] sm:$0xff]
        %v392 = vld [vmem:[#allocation7 + $0x40] sm:$0xff]
        %v393 = vld [vmem:[#allocation7 + $0x48] sm:$0xff]
        %v394 = vld [vmem:[#allocation7 + $0x50] sm:$0xff]
        %v395 = vld [vmem:[#allocation7 + $0x58] sm:$0xff]
        %v396 = vld [vmem:[#allocation7 + $0x60] sm:$0xff]
        %v397 = vld [vmem:[#allocation7 + $0x68] sm:$0xff]
        %v398 = vld [vmem:[#allocation7 + $0x70] sm:$0xff]
        %v399 = vld [vmem:[#allocation7 + $0x78] sm:$0xff]
        %v400 = vld [vmem:[#allocation7 + $0x80] sm:$0xff]
        %v401 = vld [vmem:[#allocation7 + $0x88] sm:$0xff]
        %v402 = vld [vmem:[#allocation7 + $0x90] sm:$0xff]
        %v403 = vld [vmem:[#allocation7 + $0x98] sm:$0xff]
        %v404 = vld [vmem:[#allocation7 + $0xa0] sm:$0xff]
        %v405 = vld [vmem:[#allocation7 + $0xa8] sm:$0xff]
        %v406 = vld [vmem:[#allocation7 + $0xb0] sm:$0xff]
        %v407 = vld [vmem:[#allocation7 + $0xb8] sm:$0xff]
        %v408 = vld [vmem:[#allocation7 + $0xc0] sm:$0xff]
        %v409 = vld [vmem:[#allocation7 + $0xc8] sm:$0xff]
        %v410 = vld [vmem:[#allocation7 + $0xd0] sm:$0xff]
        %v411 = vld [vmem:[#allocation7 + $0xd8] sm:$0xff]
        %v412 = vld [vmem:[#allocation7 + $0xe0] sm:$0xff]
        %v413 = vld [vmem:[#allocation7 + $0xe8] sm:$0xff]
        %v414 = vld [vmem:[#allocation7 + $0xf0] sm:$0xff]
        %v415 = vld [vmem:[#allocation7 + $0xf8] sm:$0xff]
        %v416 = vld [vmem:[#allocation7 + $0x100] sm:$0xff]
        %v417 = vld [vmem:[#allocation7 + $0x108] sm:$0xff]
        %v418 = vld [vmem:[#allocation7 + $0x110] sm:$0xff]
        %v419 = vld [vmem:[#allocation7 + $0x118] sm:$0xff]
        %v420 = vld [vmem:[#allocation7 + $0x120] sm:$0xff]
        %v421 = vld [vmem:[#allocation7 + $0x128] sm:$0xff]
        %v422 = vld [vmem:[#allocation7 + $0x130] sm:$0xff]
        %v423 = vld [vmem:[#allocation7 + $0x138] sm:$0xff]
        %v424 = vld [vmem:[#allocation7 + $0x140] sm:$0xff]
        %v425 = vld [vmem:[#allocation7 + $0x148] sm:$0xff]
        %v426 = vld [vmem:[#allocation7 + $0x150] sm:$0xff]
        %v427 = vld [vmem:[#allocation7 + $0x158] sm:$0xff]
        %v428 = vld [vmem:[#allocation7 + $0x160] sm:$0xff]
        %v429 = vld [vmem:[#allocation7 + $0x168] sm:$0xff]
        %v430 = vld [vmem:[#allocation7 + $0x170] sm:$0xff]
        %v431 = vld [vmem:[#allocation7 + $0x178] sm:$0xff]
        %v432 = vld [vmem:[#allocation7 + $0x180] sm:$0xff]
        %v433 = vld [vmem:[#allocation7 + $0x188] sm:$0xff]
        %v434 = vld [vmem:[#allocation7 + $0x190] sm:$0xff]
        %v435 = vld [vmem:[#allocation7 + $0x198] sm:$0xff]
        %v436 = vld [vmem:[#allocation7 + $0x1a0] sm:$0xff]
        %v437 = vld [vmem:[#allocation7 + $0x1a8] sm:$0xff]
        %v438 = vld [vmem:[#allocation7 + $0x1b0] sm:$0xff]
        %v439 = vld [vmem:[#allocation7 + $0x1b8] sm:$0xff]
        %v440 = vld [vmem:[#allocation7 + $0x1c0] sm:$0xff]
        %v441 = vld [vmem:[#allocation7 + $0x1c8] sm:$0xff]
        %v442 = vld [vmem:[#allocation7 + $0x1d0] sm:$0xff]
        %v443 = vld [vmem:[#allocation7 + $0x1d8] sm:$0xff]
        %v444 = vld [vmem:[#allocation7 + $0x1e0] sm:$0xff]
        %v445 = vld [vmem:[#allocation7 + $0x1e8] sm:$0xff]
        %v446 = vld [vmem:[#allocation7 + $0x1f0] sm:$0xff]
        %v447 = vld [vmem:[#allocation7 + $0x1f8] sm:$0xff]
        %v448 = vld [vmem:[#allocation7 + $0x200] sm:$0xff]
        %v449 = vld [vmem:[#allocation7 + $0x208] sm:$0xff]
        %v450 = vld [vmem:[#allocation7 + $0x210] sm:$0xff]
        %v451 = vld [vmem:[#allocation7 + $0x218] sm:$0xff]
        %v452 = vld [vmem:[#allocation7 + $0x220] sm:$0xff]
        %v453 = vld [vmem:[#allocation7 + $0x228] sm:$0xff]
        %v454 = vld [vmem:[#allocation7 + $0x230] sm:$0xff]
        %v455 = vld [vmem:[#allocation7 + $0x238] sm:$0xff]
        %v456 = vld [vmem:[#allocation7 + $0x240] sm:$0xff]
        %v457 = vld [vmem:[#allocation7 + $0x248] sm:$0xff]
        %v458 = vld [vmem:[#allocation7 + $0x250] sm:$0xff]
        %v459 = vld [vmem:[#allocation7 + $0x258] sm:$0xff]
        %v460 = vld [vmem:[#allocation7 + $0x260] sm:$0xff]
        %v461 = vld [vmem:[#allocation7 + $0x268] sm:$0xff]
        %v462 = vld [vmem:[#allocation7 + $0x270] sm:$0xff]
        %v463 = vld [vmem:[#allocation7 + $0x278] sm:$0xff]
        %v464 = vld [vmem:[#allocation7 + $0x280] sm:$0xff]
        %v465 = vld [vmem:[#allocation7 + $0x288] sm:$0xff]
        %v466 = vld [vmem:[#allocation7 + $0x290] sm:$0xff]
        %v467 = vld [vmem:[#allocation7 + $0x298] sm:$0xff]
        %v468 = vld [vmem:[#allocation7 + $0x2a0] sm:$0xff]
        %v469 = vld [vmem:[#allocation7 + $0x2a8] sm:$0xff]
        %v470 = vld [vmem:[#allocation7 + $0x2b0] sm:$0xff]
        %v471 = vld [vmem:[#allocation7 + $0x2b8] sm:$0xff]
        %v472 = vld [vmem:[#allocation7 + $0x2c0] sm:$0xff]
        %v473 = vld [vmem:[#allocation7 + $0x2c8] sm:$0xff]
        %v474 = vld [vmem:[#allocation7 + $0x2d0] sm:$0xff]
        %v475 = vld [vmem:[#allocation7 + $0x2d8] sm:$0xff]
        %v476 = vld [vmem:[#allocation7 + $0x2e0] sm:$0xff]
        %v477 = vld [vmem:[#allocation7 + $0x2e8] sm:$0xff]
        %v478 = vld [vmem:[#allocation7 + $0x2f0] sm:$0xff]
        %v479 = vld [vmem:[#allocation7 + $0x2f8] sm:$0xff]
        %v480 = vld [vmem:[#allocation7 + $0x300] sm:$0xff]
        %v481 = vld [vmem:[#allocation7 + $0x308] sm:$0xff]
        %v482 = vld [vmem:[#allocation7 + $0x310] sm:$0xff]
        %v483 = vld [vmem:[#allocation7 + $0x318] sm:$0xff]
        %v484 = vld [vmem:[#allocation7 + $0x320] sm:$0xff]
        %v485 = vld [vmem:[#allocation7 + $0x328] sm:$0xff]
        %v486 = vld [vmem:[#allocation7 + $0x330] sm:$0xff]
        %v487 = vld [vmem:[#allocation7 + $0x338] sm:$0xff]
        %v488 = vld [vmem:[#allocation7 + $0x340] sm:$0xff]
        %v489 = vld [vmem:[#allocation7 + $0x348] sm:$0xff]
        %v490 = vld [vmem:[#allocation7 + $0x350] sm:$0xff]
        %v491 = vld [vmem:[#allocation7 + $0x358] sm:$0xff]
        %v492 = vld [vmem:[#allocation7 + $0x360] sm:$0xff]
        %v493 = vld [vmem:[#allocation7 + $0x368] sm:$0xff]
        %v494 = vld [vmem:[#allocation7 + $0x370] sm:$0xff]
        %v495 = vld [vmem:[#allocation7 + $0x378] sm:$0xff]
        %v496 = vld [vmem:[#allocation7 + $0x380] sm:$0xff]
        %v497 = vld [vmem:[#allocation7 + $0x388] sm:$0xff]
        %v498 = vld [vmem:[#allocation7 + $0x390] sm:$0xff]
        %v499 = vld [vmem:[#allocation7 + $0x398] sm:$0xff]
        %v500 = vld [vmem:[#allocation7 + $0x3a0] sm:$0xff]
        %v501 = vld [vmem:[#allocation7 + $0x3a8] sm:$0xff]
        %v502 = vld [vmem:[#allocation7 + $0x3b0] sm:$0xff]
        %v503 = vld [vmem:[#allocation7 + $0x3b8] sm:$0xff]
        %v504 = vld [vmem:[#allocation7 + $0x3c0] sm:$0xff]
        %v505 = vld [vmem:[#allocation7 + $0x3c8] sm:$0xff]
        %v506 = vld [vmem:[#allocation7 + $0x3d0] sm:$0xff]
        %v507 = vld [vmem:[#allocation7 + $0x3d8] sm:$0xff]
        %v508 = vld [vmem:[#allocation7 + $0x3e0] sm:$0xff]
        %v509 = vld [vmem:[#allocation7 + $0x3e8] sm:$0xff]
        %v510 = vld [vmem:[#allocation7 + $0x3f0] sm:$0xff]
        %v511 = vld [vmem:[#allocation7 + $0x3f8] sm:$0xff]
        %v516 = vunpack.c.l.b16 %v380
        %v517 = vunpack.c.h.b16 %v380
        %v518 = vunpack.c.l.b16 %v381
        %v519 = vunpack.c.h.b16 %v381
        %v520 = vunpack.c.l.b16 %v382
        %v521 = vunpack.c.h.b16 %v382
        %v522 = vunpack.c.l.b16 %v383
        %v523 = vunpack.c.h.b16 %v383
        %v524 = vpack.c.b16 %v516, %v516
        %v525 = vpack.c.b16 %v517, %v517
        %v526 = vpack.c.b16 %v518, %v518
        %v527 = vpack.c.b16 %v519, %v519
        %v528 = vpack.c.b16 %v520, %v520
        %v529 = vpack.c.b16 %v521, %v521
        %v530 = vpack.c.b16 %v522, %v522
        %v531 = vpack.c.b16 %v523, %v523
        %v668 = vunpack.c.l.b16 %v384
        %v669 = vunpack.c.h.b16 %v384
        %v670 = vunpack.c.l.b16 %v385
        %v671 = vunpack.c.h.b16 %v385
        %v672 = vunpack.c.l.b16 %v386
        %v673 = vunpack.c.h.b16 %v386
        %v674 = vunpack.c.l.b16 %v387
        %v675 = vunpack.c.h.b16 %v387
        %v676 = vunpack.c.l.b16 %v388
        %v677 = vunpack.c.h.b16 %v388
        %v678 = vunpack.c.l.b16 %v389
        %v679 = vunpack.c.h.b16 %v389
        %v680 = vunpack.c.l.b16 %v390
        %v681 = vunpack.c.h.b16 %v390
        %v682 = vunpack.c.l.b16 %v391
        %v683 = vunpack.c.h.b16 %v391
        %v684 = vunpack.c.l.b16 %v392
        %v685 = vunpack.c.h.b16 %v392
        %v686 = vunpack.c.l.b16 %v393
        %v687 = vunpack.c.h.b16 %v393
        %v688 = vunpack.c.l.b16 %v394
        %v689 = vunpack.c.h.b16 %v394
        %v690 = vunpack.c.l.b16 %v395
        %v691 = vunpack.c.h.b16 %v395
        %v692 = vunpack.c.l.b16 %v396
        %v693 = vunpack.c.h.b16 %v396
        %v694 = vunpack.c.l.b16 %v397
        %v695 = vunpack.c.h.b16 %v397
        %v696 = vunpack.c.l.b16 %v398
        %v697 = vunpack.c.h.b16 %v398
        %v698 = vunpack.c.l.b16 %v399
        %v699 = vunpack.c.h.b16 %v399
        %v700 = vunpack.c.l.b16 %v400
        %v701 = vunpack.c.h.b16 %v400
        %v702 = vunpack.c.l.b16 %v401
        %v703 = vunpack.c.h.b16 %v401
        %v704 = vunpack.c.l.b16 %v402
        %v705 = vunpack.c.h.b16 %v402
        %v706 = vunpack.c.l.b16 %v403
        %v707 = vunpack.c.h.b16 %v403
        %v708 = vunpack.c.l.b16 %v404
        %v709 = vunpack.c.h.b16 %v404
        %v710 = vunpack.c.l.b16 %v405
        %v711 = vunpack.c.h.b16 %v405
        %v712 = vunpack.c.l.b16 %v406
        %v713 = vunpack.c.h.b16 %v406
        %v714 = vunpack.c.l.b16 %v407
        %v715 = vunpack.c.h.b16 %v407
        %v716 = vunpack.c.l.b16 %v408
        %v717 = vunpack.c.h.b16 %v408
        %v718 = vunpack.c.l.b16 %v409
        %v719 = vunpack.c.h.b16 %v409
        %v720 = vunpack.c.l.b16 %v410
        %v721 = vunpack.c.h.b16 %v410
        %v722 = vunpack.c.l.b16 %v411
        %v723 = vunpack.c.h.b16 %v411
        %v724 = vunpack.c.l.b16 %v412
        %v725 = vunpack.c.h.b16 %v412
        %v726 = vunpack.c.l.b16 %v413
        %v727 = vunpack.c.h.b16 %v413
        %v728 = vunpack.c.l.b16 %v414
        %v729 = vunpack.c.h.b16 %v414
        %v730 = vunpack.c.l.b16 %v415
        %v731 = vunpack.c.h.b16 %v415
        %v732 = vunpack.c.l.b16 %v416
        %v733 = vunpack.c.h.b16 %v416
        %v734 = vunpack.c.l.b16 %v417
        %v735 = vunpack.c.h.b16 %v417
        %v736 = vunpack.c.l.b16 %v418
        %v737 = vunpack.c.h.b16 %v418
        %v738 = vunpack.c.l.b16 %v419
        %v739 = vunpack.c.h.b16 %v419
        %v740 = vunpack.c.l.b16 %v420
        %v741 = vunpack.c.h.b16 %v420
        %v742 = vunpack.c.l.b16 %v421
        %v743 = vunpack.c.h.b16 %v421
        %v744 = vunpack.c.l.b16 %v422
        %v745 = vunpack.c.h.b16 %v422
        %v746 = vunpack.c.l.b16 %v423
        %v747 = vunpack.c.h.b16 %v423
        %v748 = vunpack.c.l.b16 %v424
        %v749 = vunpack.c.h.b16 %v424
        %v750 = vunpack.c.l.b16 %v425
        %v751 = vunpack.c.h.b16 %v425
        %v752 = vunpack.c.l.b16 %v426
        %v753 = vunpack.c.h.b16 %v426
        %v754 = vunpack.c.l.b16 %v427
        %v755 = vunpack.c.h.b16 %v427
        %v756 = vunpack.c.l.b16 %v428
        %v757 = vunpack.c.h.b16 %v428
        %v758 = vunpack.c.l.b16 %v429
        %v759 = vunpack.c.h.b16 %v429
        %v760 = vunpack.c.l.b16 %v430
        %v761 = vunpack.c.h.b16 %v430
        %v762 = vunpack.c.l.b16 %v431
        %v763 = vunpack.c.h.b16 %v431
        %v764 = vunpack.c.l.b16 %v432
        %v765 = vunpack.c.h.b16 %v432
        %v766 = vunpack.c.l.b16 %v433
        %v767 = vunpack.c.h.b16 %v433
        %v768 = vunpack.c.l.b16 %v434
        %v769 = vunpack.c.h.b16 %v434
        %v770 = vunpack.c.l.b16 %v435
        %v771 = vunpack.c.h.b16 %v435
        %v772 = vunpack.c.l.b16 %v436
        %v773 = vunpack.c.h.b16 %v436
        %v774 = vunpack.c.l.b16 %v437
        %v775 = vunpack.c.h.b16 %v437
        %v776 = vunpack.c.l.b16 %v438
        %v777 = vunpack.c.h.b16 %v438
        %v778 = vunpack.c.l.b16 %v439
        %v779 = vunpack.c.h.b16 %v439
        %v780 = vunpack.c.l.b16 %v440
        %v781 = vunpack.c.h.b16 %v440
        %v782 = vunpack.c.l.b16 %v441
        %v783 = vunpack.c.h.b16 %v441
        %v784 = vunpack.c.l.b16 %v442
        %v785 = vunpack.c.h.b16 %v442
        %v786 = vunpack.c.l.b16 %v443
        %v787 = vunpack.c.h.b16 %v443
        %v788 = vunpack.c.l.b16 %v444
        %v789 = vunpack.c.h.b16 %v444
        %v790 = vunpack.c.l.b16 %v445
        %v791 = vunpack.c.h.b16 %v445
        %v792 = vunpack.c.l.b16 %v446
        %v793 = vunpack.c.h.b16 %v446
        %v794 = vunpack.c.l.b16 %v447
        %v795 = vunpack.c.h.b16 %v447
        %v796 = vunpack.c.l.b16 %v448
        %v797 = vunpack.c.h.b16 %v448
        %v798 = vunpack.c.l.b16 %v449
        %v799 = vunpack.c.h.b16 %v449
        %v800 = vunpack.c.l.b16 %v450
        %v801 = vunpack.c.h.b16 %v450
        %v802 = vunpack.c.l.b16 %v451
        %v803 = vunpack.c.h.b16 %v451
        %v804 = vunpack.c.l.b16 %v452
        %v805 = vunpack.c.h.b16 %v452
        %v806 = vunpack.c.l.b16 %v453
        %v807 = vunpack.c.h.b16 %v453
        %v808 = vunpack.c.l.b16 %v454
        %v809 = vunpack.c.h.b16 %v454
        %v810 = vunpack.c.l.b16 %v455
        %v811 = vunpack.c.h.b16 %v455
        %v812 = vunpack.c.l.b16 %v456
        %v813 = vunpack.c.h.b16 %v456
        %v814 = vunpack.c.l.b16 %v457
        %v815 = vunpack.c.h.b16 %v457
        %v816 = vunpack.c.l.b16 %v458
        %v817 = vunpack.c.h.b16 %v458
        %v818 = vunpack.c.l.b16 %v459
        %v819 = vunpack.c.h.b16 %v459
        %v820 = vunpack.c.l.b16 %v460
        %v821 = vunpack.c.h.b16 %v460
        %v822 = vunpack.c.l.b16 %v461
        %v823 = vunpack.c.h.b16 %v461
        %v824 = vunpack.c.l.b16 %v462
        %v825 = vunpack.c.h.b16 %v462
        %v826 = vunpack.c.l.b16 %v463
        %v827 = vunpack.c.h.b16 %v463
        %v828 = vunpack.c.l.b16 %v464
        %v829 = vunpack.c.h.b16 %v464
        %v830 = vunpack.c.l.b16 %v465
        %v831 = vunpack.c.h.b16 %v465
        %v832 = vunpack.c.l.b16 %v466
        %v833 = vunpack.c.h.b16 %v466
        %v834 = vunpack.c.l.b16 %v467
        %v835 = vunpack.c.h.b16 %v467
        %v836 = vunpack.c.l.b16 %v468
        %v837 = vunpack.c.h.b16 %v468
        %v838 = vunpack.c.l.b16 %v469
        %v839 = vunpack.c.h.b16 %v469
        %v840 = vunpack.c.l.b16 %v470
        %v841 = vunpack.c.h.b16 %v470
        %v842 = vunpack.c.l.b16 %v471
        %v843 = vunpack.c.h.b16 %v471
        %v844 = vunpack.c.l.b16 %v472
        %v845 = vunpack.c.h.b16 %v472
        %v846 = vunpack.c.l.b16 %v473
        %v847 = vunpack.c.h.b16 %v473
        %v848 = vunpack.c.l.b16 %v474
        %v849 = vunpack.c.h.b16 %v474
        %v850 = vunpack.c.l.b16 %v475
        %v851 = vunpack.c.h.b16 %v475
        %v852 = vunpack.c.l.b16 %v476
        %v853 = vunpack.c.h.b16 %v476
        %v854 = vunpack.c.l.b16 %v477
        %v855 = vunpack.c.h.b16 %v477
        %v856 = vunpack.c.l.b16 %v478
        %v857 = vunpack.c.h.b16 %v478
        %v858 = vunpack.c.l.b16 %v479
        %v859 = vunpack.c.h.b16 %v479
        %v860 = vunpack.c.l.b16 %v480
        %v861 = vunpack.c.h.b16 %v480
        %v862 = vunpack.c.l.b16 %v481
        %v863 = vunpack.c.h.b16 %v481
        %v864 = vunpack.c.l.b16 %v482
        %v865 = vunpack.c.h.b16 %v482
        %v866 = vunpack.c.l.b16 %v483
        %v867 = vunpack.c.h.b16 %v483
        %v868 = vunpack.c.l.b16 %v484
        %v869 = vunpack.c.h.b16 %v484
        %v870 = vunpack.c.l.b16 %v485
        %v871 = vunpack.c.h.b16 %v485
        %v872 = vunpack.c.l.b16 %v486
        %v873 = vunpack.c.h.b16 %v486
        %v874 = vunpack.c.l.b16 %v487
        %v875 = vunpack.c.h.b16 %v487
        %v876 = vunpack.c.l.b16 %v488
        %v877 = vunpack.c.h.b16 %v488
        %v878 = vunpack.c.l.b16 %v489
        %v879 = vunpack.c.h.b16 %v489
        %v880 = vunpack.c.l.b16 %v490
        %v881 = vunpack.c.h.b16 %v490
        %v882 = vunpack.c.l.b16 %v491
        %v883 = vunpack.c.h.b16 %v491
        %v884 = vunpack.c.l.b16 %v492
        %v885 = vunpack.c.h.b16 %v492
        %v886 = vunpack.c.l.b16 %v493
        %v887 = vunpack.c.h.b16 %v493
        %v888 = vunpack.c.l.b16 %v494
        %v889 = vunpack.c.h.b16 %v494
        %v890 = vunpack.c.l.b16 %v495
        %v891 = vunpack.c.h.b16 %v495
        %v892 = vunpack.c.l.b16 %v496
        %v893 = vunpack.c.h.b16 %v496
        %v894 = vunpack.c.l.b16 %v497
        %v895 = vunpack.c.h.b16 %v497
        %v896 = vunpack.c.l.b16 %v498
        %v897 = vunpack.c.h.b16 %v498
        %v898 = vunpack.c.l.b16 %v499
        %v899 = vunpack.c.h.b16 %v499
        %v900 = vunpack.c.l.b16 %v500
        %v901 = vunpack.c.h.b16 %v500
        %v902 = vunpack.c.l.b16 %v501
        %v903 = vunpack.c.h.b16 %v501
        %v904 = vunpack.c.l.b16 %v502
        %v905 = vunpack.c.h.b16 %v502
        %v906 = vunpack.c.l.b16 %v503
        %v907 = vunpack.c.h.b16 %v503
        %v908 = vunpack.c.l.b16 %v504
        %v909 = vunpack.c.h.b16 %v504
        %v910 = vunpack.c.l.b16 %v505
        %v911 = vunpack.c.h.b16 %v505
        %v912 = vunpack.c.l.b16 %v506
        %v913 = vunpack.c.h.b16 %v506
        %v914 = vunpack.c.l.b16 %v507
        %v915 = vunpack.c.h.b16 %v507
        %v916 = vunpack.c.l.b16 %v508
        %v917 = vunpack.c.h.b16 %v508
        %v918 = vunpack.c.l.b16 %v509
        %v919 = vunpack.c.h.b16 %v509
        %v920 = vunpack.c.l.b16 %v510
        %v921 = vunpack.c.h.b16 %v510
        %v922 = vunpack.c.l.b16 %v511
        %v923 = vunpack.c.h.b16 %v511
        %v924 = vpack.c.b16 %v670, %v668
        %v925 = vpack.c.b16 %v671, %v669
        %v926 = vpack.c.b16 %v674, %v672
        %v927 = vpack.c.b16 %v675, %v673
        %v928 = vpack.c.b16 %v678, %v676
        %v929 = vpack.c.b16 %v679, %v677
        %v930 = vpack.c.b16 %v682, %v680
        %v931 = vpack.c.b16 %v683, %v681
        %v932 = vpack.c.b16 %v686, %v684
        %v933 = vpack.c.b16 %v687, %v685
        %v934 = vpack.c.b16 %v690, %v688
        %v935 = vpack.c.b16 %v691, %v689
        %v936 = vpack.c.b16 %v694, %v692
        %v937 = vpack.c.b16 %v695, %v693
        %v938 = vpack.c.b16 %v698, %v696
        %v939 = vpack.c.b16 %v699, %v697
        %v940 = vpack.c.b16 %v702, %v700
        %v941 = vpack.c.b16 %v703, %v701
        %v942 = vpack.c.b16 %v706, %v704
        %v943 = vpack.c.b16 %v707, %v705
        %v944 = vpack.c.b16 %v710, %v708
        %v945 = vpack.c.b16 %v711, %v709
        %v946 = vpack.c.b16 %v714, %v712
        %v947 = vpack.c.b16 %v715, %v713
        %v948 = vpack.c.b16 %v718, %v716
        %v949 = vpack.c.b16 %v719, %v717
        %v950 = vpack.c.b16 %v722, %v720
        %v951 = vpack.c.b16 %v723, %v721
        %v952 = vpack.c.b16 %v726, %v724
        %v953 = vpack.c.b16 %v727, %v725
        %v954 = vpack.c.b16 %v730, %v728
        %v955 = vpack.c.b16 %v731, %v729
        %v956 = vpack.c.b16 %v734, %v732
        %v957 = vpack.c.b16 %v735, %v733
        %v958 = vpack.c.b16 %v738, %v736
        %v959 = vpack.c.b16 %v739, %v737
        %v960 = vpack.c.b16 %v742, %v740
        %v961 = vpack.c.b16 %v743, %v741
        %v962 = vpack.c.b16 %v746, %v744
        %v963 = vpack.c.b16 %v747, %v745
        %v964 = vpack.c.b16 %v750, %v748
        %v965 = vpack.c.b16 %v751, %v749
        %v966 = vpack.c.b16 %v754, %v752
        %v967 = vpack.c.b16 %v755, %v753
        %v968 = vpack.c.b16 %v758, %v756
        %v969 = vpack.c.b16 %v759, %v757
        %v970 = vpack.c.b16 %v762, %v760
        %v971 = vpack.c.b16 %v763, %v761
        %v972 = vpack.c.b16 %v766, %v764
        %v973 = vpack.c.b16 %v767, %v765
        %v974 = vpack.c.b16 %v770, %v768
        %v975 = vpack.c.b16 %v771, %v769
        %v976 = vpack.c.b16 %v774, %v772
        %v977 = vpack.c.b16 %v775, %v773
        %v978 = vpack.c.b16 %v778, %v776
        %v979 = vpack.c.b16 %v779, %v777
        %v980 = vpack.c.b16 %v782, %v780
        %v981 = vpack.c.b16 %v783, %v781
        %v982 = vpack.c.b16 %v786, %v784
        %v983 = vpack.c.b16 %v787, %v785
        %v984 = vpack.c.b16 %v790, %v788
        %v985 = vpack.c.b16 %v791, %v789
        %v986 = vpack.c.b16 %v794, %v792
        %v987 = vpack.c.b16 %v795, %v793
        %v988 = vpack.c.b16 %v798, %v796
        %v989 = vpack.c.b16 %v799, %v797
        %v990 = vpack.c.b16 %v802, %v800
        %v991 = vpack.c.b16 %v803, %v801
        %v992 = vpack.c.b16 %v806, %v804
        %v993 = vpack.c.b16 %v807, %v805
        %v994 = vpack.c.b16 %v810, %v808
        %v995 = vpack.c.b16 %v811, %v809
        %v996 = vpack.c.b16 %v814, %v812
        %v997 = vpack.c.b16 %v815, %v813
        %v998 = vpack.c.b16 %v818, %v816
        %v999 = vpack.c.b16 %v819, %v817
        %v1000 = vpack.c.b16 %v822, %v820
        %v1001 = vpack.c.b16 %v823, %v821
        %v1002 = vpack.c.b16 %v826, %v824
        %v1003 = vpack.c.b16 %v827, %v825
        %v1004 = vpack.c.b16 %v830, %v828
        %v1005 = vpack.c.b16 %v831, %v829
        %v1006 = vpack.c.b16 %v834, %v832
        %v1007 = vpack.c.b16 %v835, %v833
        %v1008 = vpack.c.b16 %v838, %v836
        %v1009 = vpack.c.b16 %v839, %v837
        %v1010 = vpack.c.b16 %v842, %v840
        %v1011 = vpack.c.b16 %v843, %v841
        %v1012 = vpack.c.b16 %v846, %v844
        %v1013 = vpack.c.b16 %v847, %v845
        %v1014 = vpack.c.b16 %v850, %v848
        %v1015 = vpack.c.b16 %v851, %v849
        %v1016 = vpack.c.b16 %v854, %v852
        %v1017 = vpack.c.b16 %v855, %v853
        %v1018 = vpack.c.b16 %v858, %v856
        %v1019 = vpack.c.b16 %v859, %v857
        %v1020 = vpack.c.b16 %v862, %v860
        %v1021 = vpack.c.b16 %v863, %v861
        %v1022 = vpack.c.b16 %v866, %v864
        %v1023 = vpack.c.b16 %v867, %v865
        %v1024 = vpack.c.b16 %v870, %v868
        %v1025 = vpack.c.b16 %v871, %v869
        %v1026 = vpack.c.b16 %v874, %v872
        %v1027 = vpack.c.b16 %v875, %v873
        %v1028 = vpack.c.b16 %v878, %v876
        %v1029 = vpack.c.b16 %v879, %v877
        %v1030 = vpack.c.b16 %v882, %v880
        %v1031 = vpack.c.b16 %v883, %v881
        %v1032 = vpack.c.b16 %v886, %v884
        %v1033 = vpack.c.b16 %v887, %v885
        %v1034 = vpack.c.b16 %v890, %v888
        %v1035 = vpack.c.b16 %v891, %v889
        %v1036 = vpack.c.b16 %v894, %v892
        %v1037 = vpack.c.b16 %v895, %v893
        %v1038 = vpack.c.b16 %v898, %v896
        %v1039 = vpack.c.b16 %v899, %v897
        %v1040 = vpack.c.b16 %v902, %v900
        %v1041 = vpack.c.b16 %v903, %v901
        %v1042 = vpack.c.b16 %v906, %v904
        %v1043 = vpack.c.b16 %v907, %v905
        %v1044 = vpack.c.b16 %v910, %v908
        %v1045 = vpack.c.b16 %v911, %v909
        %v1046 = vpack.c.b16 %v914, %v912
        %v1047 = vpack.c.b16 %v915, %v913
        %v1048 = vpack.c.b16 %v918, %v916
        %v1049 = vpack.c.b16 %v919, %v917
        %v1050 = vpack.c.b16 %v922, %v920
        %v1051 = vpack.c.b16 %v923, %v921
        %1180 = vmatprep.subr.bf16.mxu0 %v925
        %1181 = vmatpush1.bf16.msra.mxu0 %v924
        %1182 = vmatprep.subr.bf16.mxu0 %v927
        %1183 = vmatpush1.bf16.msra.mxu0 %v926
        %1184 = vmatprep.subr.bf16.mxu0 %v929
        %1185 = vmatpush1.bf16.msra.mxu0 %v928
        %1186 = vmatprep.subr.bf16.mxu0 %v931
        %1187 = vmatpush1.bf16.msra.mxu0 %v930
        %1188 = vmatprep.subr.bf16.mxu0 %v933
        %1189 = vmatpush1.bf16.msra.mxu0 %v932
        %1190 = vmatprep.subr.bf16.mxu0 %v935
        %1191 = vmatpush1.bf16.msra.mxu0 %v934
        %1192 = vmatprep.subr.bf16.mxu0 %v937
        %1193 = vmatpush1.bf16.msra.mxu0 %v936
        %1194 = vmatprep.subr.bf16.mxu0 %v939
        %1195 = vmatpush1.bf16.msra.mxu0 %v938
        %1196 = vmatprep.subr.bf16.mxu0 %v941
        %1197 = vmatpush1.bf16.msra.mxu0 %v940
        %1198 = vmatprep.subr.bf16.mxu0 %v943
        %1199 = vmatpush1.bf16.msra.mxu0 %v942
        %1200 = vmatprep.subr.bf16.mxu0 %v945
        %1201 = vmatpush1.bf16.msra.mxu0 %v944
        %1202 = vmatprep.subr.bf16.mxu0 %v947
        %1203 = vmatpush1.bf16.msra.mxu0 %v946
        %1204 = vmatprep.subr.bf16.mxu0 %v949
        %1205 = vmatpush1.bf16.msra.mxu0 %v948
        %1206 = vmatprep.subr.bf16.mxu0 %v951
        %1207 = vmatpush1.bf16.msra.mxu0 %v950
        %1208 = vmatprep.subr.bf16.mxu0 %v953
        %1209 = vmatpush1.bf16.msra.mxu0 %v952
        %1210 = vmatprep.subr.bf16.mxu0 %v955
        %1211 = vmatpush1.bf16.msra.mxu0 %v954
        %1212 = vmatprep.mubr.bf16.mxu0 %v525
        %1213 = vmatmul.mubr.bf16.gmra.mrb[0].mxu0 %v524
        %v1214 = vpop.f32.mrb[0].mxu0
        %v1215 = vadd.f32 0.0, %v1214
        %v1216 = vpop.f32.mrb[0].mxu0
        %v1217 = vadd.f32 0.0, %v1216
        %v1218 = vpop.f32.mrb[0].mxu0
        %v1219 = vpop.f32.mrb[0].mxu0
        %1220 = vdwg.mxu0
        %1221 = vmatprep.subr.bf16.mxu0 %v957
        %1222 = vmatpush1.bf16.msra.mxu0 %v956
        %1223 = vmatprep.subr.bf16.mxu0 %v959
        %1224 = vmatpush1.bf16.msra.mxu0 %v958
        %1225 = vmatprep.subr.bf16.mxu0 %v961
        %1226 = vmatpush1.bf16.msra.mxu0 %v960
        %1227 = vmatprep.subr.bf16.mxu0 %v963
        %1228 = vmatpush1.bf16.msra.mxu0 %v962
        %1229 = vmatprep.subr.bf16.mxu0 %v965
        %1230 = vmatpush1.bf16.msra.mxu0 %v964
        %1231 = vmatprep.subr.bf16.mxu0 %v967
        %1232 = vmatpush1.bf16.msra.mxu0 %v966
        %1233 = vmatprep.subr.bf16.mxu0 %v969
        %1234 = vmatpush1.bf16.msra.mxu0 %v968
        %1235 = vmatprep.subr.bf16.mxu0 %v971
        %1236 = vmatpush1.bf16.msra.mxu0 %v970
        %1237 = vmatprep.subr.bf16.mxu0 %v973
        %1238 = vmatpush1.bf16.msra.mxu0 %v972
        %1239 = vmatprep.subr.bf16.mxu0 %v975
        %1240 = vmatpush1.bf16.msra.mxu0 %v974
        %1241 = vmatprep.subr.bf16.mxu0 %v977
        %1242 = vmatpush1.bf16.msra.mxu0 %v976
        %1243 = vmatprep.subr.bf16.mxu0 %v979
        %1244 = vmatpush1.bf16.msra.mxu0 %v978
        %1245 = vmatprep.subr.bf16.mxu0 %v981
        %1246 = vmatpush1.bf16.msra.mxu0 %v980
        %1247 = vmatprep.subr.bf16.mxu0 %v983
        %1248 = vmatpush1.bf16.msra.mxu0 %v982
        %1249 = vmatprep.subr.bf16.mxu0 %v985
        %1250 = vmatpush1.bf16.msra.mxu0 %v984
        %1251 = vmatprep.subr.bf16.mxu0 %v987
        %1252 = vmatpush1.bf16.msra.mxu0 %v986
        %1253 = vmatprep.mubr.bf16.mxu0 %v527
        %1254 = vmatmul.mubr.bf16.gmra.mrb[0].mxu0 %v526
        %v1255 = vpop.f32.mrb[0].mxu0
        %v1256 = vadd.f32 %v1215, %v1255
        %v1257 = vpop.f32.mrb[0].mxu0
        %v1258 = vadd.f32 %v1217, %v1257
        %v1259 = vpop.f32.mrb[0].mxu0
        %v1260 = vpop.f32.mrb[0].mxu0
        %1261 = vdwg.mxu0
        %1262 = vmatprep.subr.bf16.mxu0 %v989
        %1263 = vmatpush1.bf16.msra.mxu0 %v988
        %1264 = vmatprep.subr.bf16.mxu0 %v991
        %1265 = vmatpush1.bf16.msra.mxu0 %v990
        %1266 = vmatprep.subr.bf16.mxu0 %v993
        %1267 = vmatpush1.bf16.msra.mxu0 %v992
        %1268 = vmatprep.subr.bf16.mxu0 %v995
        %1269 = vmatpush1.bf16.msra.mxu0 %v994
        %1270 = vmatprep.subr.bf16.mxu0 %v997
        %1271 = vmatpush1.bf16.msra.mxu0 %v996
        %1272 = vmatprep.subr.bf16.mxu0 %v999
        %1273 = vmatpush1.bf16.msra.mxu0 %v998
        %1274 = vmatprep.subr.bf16.mxu0 %v1001
        %1275 = vmatpush1.bf16.msra.mxu0 %v1000
        %1276 = vmatprep.subr.bf16.mxu0 %v1003
        %1277 = vmatpush1.bf16.msra.mxu0 %v1002
        %1278 = vmatprep.subr.bf16.mxu0 %v1005
        %1279 = vmatpush1.bf16.msra.mxu0 %v1004
        %1280 = vmatprep.subr.bf16.mxu0 %v1007
        %1281 = vmatpush1.bf16.msra.mxu0 %v1006
        %1282 = vmatprep.subr.bf16.mxu0 %v1009
        %1283 = vmatpush1.bf16.msra.mxu0 %v1008
        %1284 = vmatprep.subr.bf16.mxu0 %v1011
        %1285 = vmatpush1.bf16.msra.mxu0 %v1010
        %1286 = vmatprep.subr.bf16.mxu0 %v1013
        %1287 = vmatpush1.bf16.msra.mxu0 %v1012
        %1288 = vmatprep.subr.bf16.mxu0 %v1015
        %1289 = vmatpush1.bf16.msra.mxu0 %v1014
        %1290 = vmatprep.subr.bf16.mxu0 %v1017
        %1291 = vmatpush1.bf16.msra.mxu0 %v1016
        %1292 = vmatprep.subr.bf16.mxu0 %v1019
        %1293 = vmatpush1.bf16.msra.mxu0 %v1018
        %1294 = vmatprep.mubr.bf16.mxu0 %v529
        %1295 = vmatmul.mubr.bf16.gmra.mrb[0].mxu0 %v528
        %v1296 = vpop.f32.mrb[0].mxu0
        %v1297 = vadd.f32 %v1256, %v1296
        %v1298 = vpop.f32.mrb[0].mxu0
        %v1299 = vadd.f32 %v1258, %v1298
        %v1300 = vpop.f32.mrb[0].mxu0
        %v1301 = vpop.f32.mrb[0].mxu0
        %1302 = vdwg.mxu0
        %1303 = vmatprep.subr.bf16.mxu0 %v1021
        %1304 = vmatpush1.bf16.msra.mxu0 %v1020
        %1305 = vmatprep.subr.bf16.mxu0 %v1023
        %1306 = vmatpush1.bf16.msra.mxu0 %v1022
        %1307 = vmatprep.subr.bf16.mxu0 %v1025
        %1308 = vmatpush1.bf16.msra.mxu0 %v1024
        %1309 = vmatprep.subr.bf16.mxu0 %v1027
        %1310 = vmatpush1.bf16.msra.mxu0 %v1026
        %1311 = vmatprep.subr.bf16.mxu0 %v1029
        %1312 = vmatpush1.bf16.msra.mxu0 %v1028
        %1313 = vmatprep.subr.bf16.mxu0 %v1031
        %1314 = vmatpush1.bf16.msra.mxu0 %v1030
        %1315 = vmatprep.subr.bf16.mxu0 %v1033
        %1316 = vmatpush1.bf16.msra.mxu0 %v1032
        %1317 = vmatprep.subr.bf16.mxu0 %v1035
        %1318 = vmatpush1.bf16.msra.mxu0 %v1034
        %1319 = vmatprep.subr.bf16.mxu0 %v1037
        %1320 = vmatpush1.bf16.msra.mxu0 %v1036
        %1321 = vmatprep.subr.bf16.mxu0 %v1039
        %1322 = vmatpush1.bf16.msra.mxu0 %v1038
        %1323 = vmatprep.subr.bf16.mxu0 %v1041
        %1324 = vmatpush1.bf16.msra.mxu0 %v1040
        %1325 = vmatprep.subr.bf16.mxu0 %v1043
        %1326 = vmatpush1.bf16.msra.mxu0 %v1042
        %1327 = vmatprep.subr.bf16.mxu0 %v1045
        %1328 = vmatpush1.bf16.msra.mxu0 %v1044
        %1329 = vmatprep.subr.bf16.mxu0 %v1047
        %1330 = vmatpush1.bf16.msra.mxu0 %v1046
        %1331 = vmatprep.subr.bf16.mxu0 %v1049
        %1332 = vmatpush1.bf16.msra.mxu0 %v1048
        %1333 = vmatprep.subr.bf16.mxu0 %v1051
        %1334 = vmatpush1.bf16.msra.mxu0 %v1050
        %1335 = vmatprep.mubr.bf16.mxu0 %v531
        %1336 = vmatmul.mubr.bf16.gmra.mrb[0].mxu0 %v530
        %v1337 = vpop.f32.mrb[0].mxu0
        %v1338 = vadd.f32 %v1297, %v1337
        %v1339 = vpop.f32.mrb[0].mxu0
        %v1340 = vadd.f32 %v1299, %v1339
        %v1341 = vpop.f32.mrb[0].mxu0
        %v1342 = vpop.f32.mrb[0].mxu0
        %1343 = vdwg.mxu0
        %v1344 = vadd.f32 %v378, %v1338
        %v1345 = vadd.f32 %v379, %v1340
        %1346 = vst [vmem:[#allocation2] sm:$0xff] %v1344
        %1347 = vst [vmem:[#allocation2 + $0x8] sm:$0xff] %v1345
        // Predicated region
        $region65: #{tpu_custom_call.1} parent=39 // pred_check
          %p1348 = pneg %p359
        $region66: #{tpu_custom_call.1} parent=39 // pred_check_branch
          %1350 = sbr.rel (%p1348) target = $region68
        $region67: #{tpu_custom_call.1} parent=39 // pred_region
          %v1351 = vld [vmem:[#allocation2] sm:$0xff]
          %v1352 = vld [vmem:[#allocation2 + $0x8] sm:$0xff]
          %v1353 = vld [vmem:[%s318] sm:$0xff]
          %v1354 = vld [vmem:[%s318 + $0x8] sm:$0xff]
          %v1355 = vadd.f32 %v1351, %v1353
          %v1356 = vadd.f32 %v1352, %v1354
          %v1357 = vmax.f32 %v1355, 0.0
          %v1358 = vmax.f32 %v1356, 0.0
          %v1359 = vpack.c.bf16 %v1357, %v1357
          %v1360 = vpack.c.bf16 %v1358, %v1358
          %v1361 = vld [vmem:[#allocation3] sm:$0xff]
          %v1362 = vld [vmem:[#allocation3 + $0x8] sm:$0xff]
          %v1363 = vld [vmem:[#allocation3 + $0x10] sm:$0xff]
          %v1364 = vld [vmem:[#allocation3 + $0x18] sm:$0xff]
          %v1365 = vld [vmem:[#allocation3 + $0x20] sm:$0xff]
          %v1366 = vld [vmem:[#allocation3 + $0x28] sm:$0xff]
          %v1367 = vld [vmem:[#allocation3 + $0x30] sm:$0xff]
          %v1368 = vld [vmem:[#allocation3 + $0x38] sm:$0xff]
          %v1369 = vld [vmem:[#allocation10] sm:$0xff]
          %v1370 = vld [vmem:[#allocation10 + $0x8] sm:$0xff]
          %v1371 = vld [vmem:[#allocation10 + $0x10] sm:$0xff]
          %v1372 = vld [vmem:[#allocation10 + $0x18] sm:$0xff]
          %v1373 = vld [vmem:[#allocation10 + $0x20] sm:$0xff]
          %v1374 = vld [vmem:[#allocation10 + $0x28] sm:$0xff]
          %v1375 = vld [vmem:[#allocation10 + $0x30] sm:$0xff]
          %v1376 = vld [vmem:[#allocation10 + $0x38] sm:$0xff]
          %v1377 = vld [vmem:[#allocation10 + $0x40] sm:$0xff]
          %v1378 = vld [vmem:[#allocation10 + $0x48] sm:$0xff]
          %v1379 = vld [vmem:[#allocation10 + $0x50] sm:$0xff]
          %v1380 = vld [vmem:[#allocation10 + $0x58] sm:$0xff]
          %v1381 = vld [vmem:[#allocation10 + $0x60] sm:$0xff]
          %v1382 = vld [vmem:[#allocation10 + $0x68] sm:$0xff]
          %v1383 = vld [vmem:[#allocation10 + $0x70] sm:$0xff]
          %v1384 = vld [vmem:[#allocation10 + $0x78] sm:$0xff]
          %v1385 = vld [vmem:[#allocation10 + $0x80] sm:$0xff]
          %v1386 = vld [vmem:[#allocation10 + $0x88] sm:$0xff]
          %v1387 = vld [vmem:[#allocation10 + $0x90] sm:$0xff]
          %v1388 = vld [vmem:[#allocation10 + $0x98] sm:$0xff]
          %v1389 = vld [vmem:[#allocation10 + $0xa0] sm:$0xff]
          %v1390 = vld [vmem:[#allocation10 + $0xa8] sm:$0xff]
          %v1391 = vld [vmem:[#allocation10 + $0xb0] sm:$0xff]
          %v1392 = vld [vmem:[#allocation10 + $0xb8] sm:$0xff]
          %v1393 = vld [vmem:[#allocation10 + $0xc0] sm:$0xff]
          %v1394 = vld [vmem:[#allocation10 + $0xc8] sm:$0xff]
          %v1395 = vld [vmem:[#allocation10 + $0xd0] sm:$0xff]
          %v1396 = vld [vmem:[#allocation10 + $0xd8] sm:$0xff]
          %v1397 = vld [vmem:[#allocation10 + $0xe0] sm:$0xff]
          %v1398 = vld [vmem:[#allocation10 + $0xe8] sm:$0xff]
          %v1399 = vld [vmem:[#allocation10 + $0xf0] sm:$0xff]
          %v1400 = vld [vmem:[#allocation10 + $0xf8] sm:$0xff]
          %v1401 = vld [vmem:[#allocation10 + $0x100] sm:$0xff]
          %v1402 = vld [vmem:[#allocation10 + $0x108] sm:$0xff]
          %v1403 = vld [vmem:[#allocation10 + $0x110] sm:$0xff]
          %v1404 = vld [vmem:[#allocation10 + $0x118] sm:$0xff]
          %v1405 = vld [vmem:[#allocation10 + $0x120] sm:$0xff]
          %v1406 = vld [vmem:[#allocation10 + $0x128] sm:$0xff]
          %v1407 = vld [vmem:[#allocation10 + $0x130] sm:$0xff]
          %v1408 = vld [vmem:[#allocation10 + $0x138] sm:$0xff]
          %v1409 = vld [vmem:[#allocation10 + $0x140] sm:$0xff]
          %v1410 = vld [vmem:[#allocation10 + $0x148] sm:$0xff]
          %v1411 = vld [vmem:[#allocation10 + $0x150] sm:$0xff]
          %v1412 = vld [vmem:[#allocation10 + $0x158] sm:$0xff]
          %v1413 = vld [vmem:[#allocation10 + $0x160] sm:$0xff]
          %v1414 = vld [vmem:[#allocation10 + $0x168] sm:$0xff]
          %v1415 = vld [vmem:[#allocation10 + $0x170] sm:$0xff]
          %v1416 = vld [vmem:[#allocation10 + $0x178] sm:$0xff]
          %v1417 = vld [vmem:[#allocation10 + $0x180] sm:$0xff]
          %v1418 = vld [vmem:[#allocation10 + $0x188] sm:$0xff]
          %v1419 = vld [vmem:[#allocation10 + $0x190] sm:$0xff]
          %v1420 = vld [vmem:[#allocation10 + $0x198] sm:$0xff]
          %v1421 = vld [vmem:[#allocation10 + $0x1a0] sm:$0xff]
          %v1422 = vld [vmem:[#allocation10 + $0x1a8] sm:$0xff]
          %v1423 = vld [vmem:[#allocation10 + $0x1b0] sm:$0xff]
          %v1424 = vld [vmem:[#allocation10 + $0x1b8] sm:$0xff]
          %v1425 = vld [vmem:[#allocation10 + $0x1c0] sm:$0xff]
          %v1426 = vld [vmem:[#allocation10 + $0x1c8] sm:$0xff]
          %v1427 = vld [vmem:[#allocation10 + $0x1d0] sm:$0xff]
          %v1428 = vld [vmem:[#allocation10 + $0x1d8] sm:$0xff]
          %v1429 = vld [vmem:[#allocation10 + $0x1e0] sm:$0xff]
          %v1430 = vld [vmem:[#allocation10 + $0x1e8] sm:$0xff]
          %v1431 = vld [vmem:[#allocation10 + $0x1f0] sm:$0xff]
          %v1432 = vld [vmem:[#allocation10 + $0x1f8] sm:$0xff]
          %v1433 = vld [vmem:[#allocation10 + $0x200] sm:$0xff]
          %v1434 = vld [vmem:[#allocation10 + $0x208] sm:$0xff]
          %v1435 = vld [vmem:[#allocation10 + $0x210] sm:$0xff]
          %v1436 = vld [vmem:[#allocation10 + $0x218] sm:$0xff]
          %v1437 = vld [vmem:[#allocation10 + $0x220] sm:$0xff]
          %v1438 = vld [vmem:[#allocation10 + $0x228] sm:$0xff]
          %v1439 = vld [vmem:[#allocation10 + $0x230] sm:$0xff]
          %v1440 = vld [vmem:[#allocation10 + $0x238] sm:$0xff]
          %v1441 = vld [vmem:[#allocation10 + $0x240] sm:$0xff]
          %v1442 = vld [vmem:[#allocation10 + $0x248] sm:$0xff]
          %v1443 = vld [vmem:[#allocation10 + $0x250] sm:$0xff]
          %v1444 = vld [vmem:[#allocation10 + $0x258] sm:$0xff]
          %v1445 = vld [vmem:[#allocation10 + $0x260] sm:$0xff]
          %v1446 = vld [vmem:[#allocation10 + $0x268] sm:$0xff]
          %v1447 = vld [vmem:[#allocation10 + $0x270] sm:$0xff]
          %v1448 = vld [vmem:[#allocation10 + $0x278] sm:$0xff]
          %v1449 = vld [vmem:[#allocation10 + $0x280] sm:$0xff]
          %v1450 = vld [vmem:[#allocation10 + $0x288] sm:$0xff]
          %v1451 = vld [vmem:[#allocation10 + $0x290] sm:$0xff]
          %v1452 = vld [vmem:[#allocation10 + $0x298] sm:$0xff]
          %v1453 = vld [vmem:[#allocation10 + $0x2a0] sm:$0xff]
          %v1454 = vld [vmem:[#allocation10 + $0x2a8] sm:$0xff]
          %v1455 = vld [vmem:[#allocation10 + $0x2b0] sm:$0xff]
          %v1456 = vld [vmem:[#allocation10 + $0x2b8] sm:$0xff]
          %v1457 = vld [vmem:[#allocation10 + $0x2c0] sm:$0xff]
          %v1458 = vld [vmem:[#allocation10 + $0x2c8] sm:$0xff]
          %v1459 = vld [vmem:[#allocation10 + $0x2d0] sm:$0xff]
          %v1460 = vld [vmem:[#allocation10 + $0x2d8] sm:$0xff]
          %v1461 = vld [vmem:[#allocation10 + $0x2e0] sm:$0xff]
          %v1462 = vld [vmem:[#allocation10 + $0x2e8] sm:$0xff]
          %v1463 = vld [vmem:[#allocation10 + $0x2f0] sm:$0xff]
          %v1464 = vld [vmem:[#allocation10 + $0x2f8] sm:$0xff]
          %v1465 = vld [vmem:[#allocation10 + $0x300] sm:$0xff]
          %v1466 = vld [vmem:[#allocation10 + $0x308] sm:$0xff]
          %v1467 = vld [vmem:[#allocation10 + $0x310] sm:$0xff]
          %v1468 = vld [vmem:[#allocation10 + $0x318] sm:$0xff]
          %v1469 = vld [vmem:[#allocation10 + $0x320] sm:$0xff]
          %v1470 = vld [vmem:[#allocation10 + $0x328] sm:$0xff]
          %v1471 = vld [vmem:[#allocation10 + $0x330] sm:$0xff]
          %v1472 = vld [vmem:[#allocation10 + $0x338] sm:$0xff]
          %v1473 = vld [vmem:[#allocation10 + $0x340] sm:$0xff]
          %v1474 = vld [vmem:[#allocation10 + $0x348] sm:$0xff]
          %v1475 = vld [vmem:[#allocation10 + $0x350] sm:$0xff]
          %v1476 = vld [vmem:[#allocation10 + $0x358] sm:$0xff]
          %v1477 = vld [vmem:[#allocation10 + $0x360] sm:$0xff]
          %v1478 = vld [vmem:[#allocation10 + $0x368] sm:$0xff]
          %v1479 = vld [vmem:[#allocation10 + $0x370] sm:$0xff]
          %v1480 = vld [vmem:[#allocation10 + $0x378] sm:$0xff]
          %v1481 = vld [vmem:[#allocation10 + $0x380] sm:$0xff]
          %v1482 = vld [vmem:[#allocation10 + $0x388] sm:$0xff]
          %v1483 = vld [vmem:[#allocation10 + $0x390] sm:$0xff]
          %v1484 = vld [vmem:[#allocation10 + $0x398] sm:$0xff]
          %v1485 = vld [vmem:[#allocation10 + $0x3a0] sm:$0xff]
          %v1486 = vld [vmem:[#allocation10 + $0x3a8] sm:$0xff]
          %v1487 = vld [vmem:[#allocation10 + $0x3b0] sm:$0xff]
          %v1488 = vld [vmem:[#allocation10 + $0x3b8] sm:$0xff]
          %v1489 = vld [vmem:[#allocation10 + $0x3c0] sm:$0xff]
          %v1490 = vld [vmem:[#allocation10 + $0x3c8] sm:$0xff]
          %v1491 = vld [vmem:[#allocation10 + $0x3d0] sm:$0xff]
          %v1492 = vld [vmem:[#allocation10 + $0x3d8] sm:$0xff]
          %v1493 = vld [vmem:[#allocation10 + $0x3e0] sm:$0xff]
          %v1494 = vld [vmem:[#allocation10 + $0x3e8] sm:$0xff]
          %v1495 = vld [vmem:[#allocation10 + $0x3f0] sm:$0xff]
          %v1496 = vld [vmem:[#allocation10 + $0x3f8] sm:$0xff]
          %v1625 = vunpack.c.l.b16 %v1369
          %v1626 = vunpack.c.h.b16 %v1369
          %v1627 = vunpack.c.l.b16 %v1370
          %v1628 = vunpack.c.h.b16 %v1370
          %v1629 = vunpack.c.l.b16 %v1371
          %v1630 = vunpack.c.h.b16 %v1371
          %v1631 = vunpack.c.l.b16 %v1372
          %v1632 = vunpack.c.h.b16 %v1372
          %v1633 = vunpack.c.l.b16 %v1373
          %v1634 = vunpack.c.h.b16 %v1373
          %v1635 = vunpack.c.l.b16 %v1374
          %v1636 = vunpack.c.h.b16 %v1374
          %v1637 = vunpack.c.l.b16 %v1375
          %v1638 = vunpack.c.h.b16 %v1375
          %v1639 = vunpack.c.l.b16 %v1376
          %v1640 = vunpack.c.h.b16 %v1376
          %v1641 = vunpack.c.l.b16 %v1377
          %v1642 = vunpack.c.h.b16 %v1377
          %v1643 = vunpack.c.l.b16 %v1378
          %v1644 = vunpack.c.h.b16 %v1378
          %v1645 = vunpack.c.l.b16 %v1379
          %v1646 = vunpack.c.h.b16 %v1379
          %v1647 = vunpack.c.l.b16 %v1380
          %v1648 = vunpack.c.h.b16 %v1380
          %v1649 = vunpack.c.l.b16 %v1381
          %v1650 = vunpack.c.h.b16 %v1381
          %v1651 = vunpack.c.l.b16 %v1382
          %v1652 = vunpack.c.h.b16 %v1382
          %v1653 = vunpack.c.l.b16 %v1383
          %v1654 = vunpack.c.h.b16 %v1383
          %v1655 = vunpack.c.l.b16 %v1384
          %v1656 = vunpack.c.h.b16 %v1384
          %v1657 = vunpack.c.l.b16 %v1385
          %v1658 = vunpack.c.h.b16 %v1385
          %v1659 = vunpack.c.l.b16 %v1386
          %v1660 = vunpack.c.h.b16 %v1386
          %v1661 = vunpack.c.l.b16 %v1387
          %v1662 = vunpack.c.h.b16 %v1387
          %v1663 = vunpack.c.l.b16 %v1388
          %v1664 = vunpack.c.h.b16 %v1388
          %v1665 = vunpack.c.l.b16 %v1389
          %v1666 = vunpack.c.h.b16 %v1389
          %v1667 = vunpack.c.l.b16 %v1390
          %v1668 = vunpack.c.h.b16 %v1390
          %v1669 = vunpack.c.l.b16 %v1391
          %v1670 = vunpack.c.h.b16 %v1391
          %v1671 = vunpack.c.l.b16 %v1392
          %v1672 = vunpack.c.h.b16 %v1392
          %v1673 = vunpack.c.l.b16 %v1393
          %v1674 = vunpack.c.h.b16 %v1393
          %v1675 = vunpack.c.l.b16 %v1394
          %v1676 = vunpack.c.h.b16 %v1394
          %v1677 = vunpack.c.l.b16 %v1395
          %v1678 = vunpack.c.h.b16 %v1395
          %v1679 = vunpack.c.l.b16 %v1396
          %v1680 = vunpack.c.h.b16 %v1396
          %v1681 = vunpack.c.l.b16 %v1397
          %v1682 = vunpack.c.h.b16 %v1397
          %v1683 = vunpack.c.l.b16 %v1398
          %v1684 = vunpack.c.h.b16 %v1398
          %v1685 = vunpack.c.l.b16 %v1399
          %v1686 = vunpack.c.h.b16 %v1399
          %v1687 = vunpack.c.l.b16 %v1400
          %v1688 = vunpack.c.h.b16 %v1400
          %v1689 = vunpack.c.l.b16 %v1401
          %v1690 = vunpack.c.h.b16 %v1401
          %v1691 = vunpack.c.l.b16 %v1402
          %v1692 = vunpack.c.h.b16 %v1402
          %v1693 = vunpack.c.l.b16 %v1403
          %v1694 = vunpack.c.h.b16 %v1403
          %v1695 = vunpack.c.l.b16 %v1404
          %v1696 = vunpack.c.h.b16 %v1404
          %v1697 = vunpack.c.l.b16 %v1405
          %v1698 = vunpack.c.h.b16 %v1405
          %v1699 = vunpack.c.l.b16 %v1406
          %v1700 = vunpack.c.h.b16 %v1406
          %v1701 = vunpack.c.l.b16 %v1407
          %v1702 = vunpack.c.h.b16 %v1407
          %v1703 = vunpack.c.l.b16 %v1408
          %v1704 = vunpack.c.h.b16 %v1408
          %v1705 = vunpack.c.l.b16 %v1409
          %v1706 = vunpack.c.h.b16 %v1409
          %v1707 = vunpack.c.l.b16 %v1410
          %v1708 = vunpack.c.h.b16 %v1410
          %v1709 = vunpack.c.l.b16 %v1411
          %v1710 = vunpack.c.h.b16 %v1411
          %v1711 = vunpack.c.l.b16 %v1412
          %v1712 = vunpack.c.h.b16 %v1412
          %v1713 = vunpack.c.l.b16 %v1413
          %v1714 = vunpack.c.h.b16 %v1413
          %v1715 = vunpack.c.l.b16 %v1414
          %v1716 = vunpack.c.h.b16 %v1414
          %v1717 = vunpack.c.l.b16 %v1415
          %v1718 = vunpack.c.h.b16 %v1415
          %v1719 = vunpack.c.l.b16 %v1416
          %v1720 = vunpack.c.h.b16 %v1416
          %v1721 = vunpack.c.l.b16 %v1417
          %v1722 = vunpack.c.h.b16 %v1417
          %v1723 = vunpack.c.l.b16 %v1418
          %v1724 = vunpack.c.h.b16 %v1418
          %v1725 = vunpack.c.l.b16 %v1419
          %v1726 = vunpack.c.h.b16 %v1419
          %v1727 = vunpack.c.l.b16 %v1420
          %v1728 = vunpack.c.h.b16 %v1420
          %v1729 = vunpack.c.l.b16 %v1421
          %v1730 = vunpack.c.h.b16 %v1421
          %v1731 = vunpack.c.l.b16 %v1422
          %v1732 = vunpack.c.h.b16 %v1422
          %v1733 = vunpack.c.l.b16 %v1423
          %v1734 = vunpack.c.h.b16 %v1423
          %v1735 = vunpack.c.l.b16 %v1424
          %v1736 = vunpack.c.h.b16 %v1424
          %v1737 = vunpack.c.l.b16 %v1425
          %v1738 = vunpack.c.h.b16 %v1425
          %v1739 = vunpack.c.l.b16 %v1426
          %v1740 = vunpack.c.h.b16 %v1426
          %v1741 = vunpack.c.l.b16 %v1427
          %v1742 = vunpack.c.h.b16 %v1427
          %v1743 = vunpack.c.l.b16 %v1428
          %v1744 = vunpack.c.h.b16 %v1428
          %v1745 = vunpack.c.l.b16 %v1429
          %v1746 = vunpack.c.h.b16 %v1429
          %v1747 = vunpack.c.l.b16 %v1430
          %v1748 = vunpack.c.h.b16 %v1430
          %v1749 = vunpack.c.l.b16 %v1431
          %v1750 = vunpack.c.h.b16 %v1431
          %v1751 = vunpack.c.l.b16 %v1432
          %v1752 = vunpack.c.h.b16 %v1432
          %v1753 = vunpack.c.l.b16 %v1433
          %v1754 = vunpack.c.h.b16 %v1433
          %v1755 = vunpack.c.l.b16 %v1434
          %v1756 = vunpack.c.h.b16 %v1434
          %v1757 = vunpack.c.l.b16 %v1435
          %v1758 = vunpack.c.h.b16 %v1435
          %v1759 = vunpack.c.l.b16 %v1436
          %v1760 = vunpack.c.h.b16 %v1436
          %v1761 = vunpack.c.l.b16 %v1437
          %v1762 = vunpack.c.h.b16 %v1437
          %v1763 = vunpack.c.l.b16 %v1438
          %v1764 = vunpack.c.h.b16 %v1438
          %v1765 = vunpack.c.l.b16 %v1439
          %v1766 = vunpack.c.h.b16 %v1439
          %v1767 = vunpack.c.l.b16 %v1440
          %v1768 = vunpack.c.h.b16 %v1440
          %v1769 = vunpack.c.l.b16 %v1441
          %v1770 = vunpack.c.h.b16 %v1441
          %v1771 = vunpack.c.l.b16 %v1442
          %v1772 = vunpack.c.h.b16 %v1442
          %v1773 = vunpack.c.l.b16 %v1443
          %v1774 = vunpack.c.h.b16 %v1443
          %v1775 = vunpack.c.l.b16 %v1444
          %v1776 = vunpack.c.h.b16 %v1444
          %v1777 = vunpack.c.l.b16 %v1445
          %v1778 = vunpack.c.h.b16 %v1445
          %v1779 = vunpack.c.l.b16 %v1446
          %v1780 = vunpack.c.h.b16 %v1446
          %v1781 = vunpack.c.l.b16 %v1447
          %v1782 = vunpack.c.h.b16 %v1447
          %v1783 = vunpack.c.l.b16 %v1448
          %v1784 = vunpack.c.h.b16 %v1448
          %v1785 = vunpack.c.l.b16 %v1449
          %v1786 = vunpack.c.h.b16 %v1449
          %v1787 = vunpack.c.l.b16 %v1450
          %v1788 = vunpack.c.h.b16 %v1450
          %v1789 = vunpack.c.l.b16 %v1451
          %v1790 = vunpack.c.h.b16 %v1451
          %v1791 = vunpack.c.l.b16 %v1452
          %v1792 = vunpack.c.h.b16 %v1452
          %v1793 = vunpack.c.l.b16 %v1453
          %v1794 = vunpack.c.h.b16 %v1453
          %v1795 = vunpack.c.l.b16 %v1454
          %v1796 = vunpack.c.h.b16 %v1454
          %v1797 = vunpack.c.l.b16 %v1455
          %v1798 = vunpack.c.h.b16 %v1455
          %v1799 = vunpack.c.l.b16 %v1456
          %v1800 = vunpack.c.h.b16 %v1456
          %v1801 = vunpack.c.l.b16 %v1457
          %v1802 = vunpack.c.h.b16 %v1457
          %v1803 = vunpack.c.l.b16 %v1458
          %v1804 = vunpack.c.h.b16 %v1458
          %v1805 = vunpack.c.l.b16 %v1459
          %v1806 = vunpack.c.h.b16 %v1459
          %v1807 = vunpack.c.l.b16 %v1460
          %v1808 = vunpack.c.h.b16 %v1460
          %v1809 = vunpack.c.l.b16 %v1461
          %v1810 = vunpack.c.h.b16 %v1461
          %v1811 = vunpack.c.l.b16 %v1462
          %v1812 = vunpack.c.h.b16 %v1462
          %v1813 = vunpack.c.l.b16 %v1463
          %v1814 = vunpack.c.h.b16 %v1463
          %v1815 = vunpack.c.l.b16 %v1464
          %v1816 = vunpack.c.h.b16 %v1464
          %v1817 = vunpack.c.l.b16 %v1465
          %v1818 = vunpack.c.h.b16 %v1465
          %v1819 = vunpack.c.l.b16 %v1466
          %v1820 = vunpack.c.h.b16 %v1466
          %v1821 = vunpack.c.l.b16 %v1467
          %v1822 = vunpack.c.h.b16 %v1467
          %v1823 = vunpack.c.l.b16 %v1468
          %v1824 = vunpack.c.h.b16 %v1468
          %v1825 = vunpack.c.l.b16 %v1469
          %v1826 = vunpack.c.h.b16 %v1469
          %v1827 = vunpack.c.l.b16 %v1470
          %v1828 = vunpack.c.h.b16 %v1470
          %v1829 = vunpack.c.l.b16 %v1471
          %v1830 = vunpack.c.h.b16 %v1471
          %v1831 = vunpack.c.l.b16 %v1472
          %v1832 = vunpack.c.h.b16 %v1472
          %v1833 = vunpack.c.l.b16 %v1473
          %v1834 = vunpack.c.h.b16 %v1473
          %v1835 = vunpack.c.l.b16 %v1474
          %v1836 = vunpack.c.h.b16 %v1474
          %v1837 = vunpack.c.l.b16 %v1475
          %v1838 = vunpack.c.h.b16 %v1475
          %v1839 = vunpack.c.l.b16 %v1476
          %v1840 = vunpack.c.h.b16 %v1476
          %v1841 = vunpack.c.l.b16 %v1477
          %v1842 = vunpack.c.h.b16 %v1477
          %v1843 = vunpack.c.l.b16 %v1478
          %v1844 = vunpack.c.h.b16 %v1478
          %v1845 = vunpack.c.l.b16 %v1479
          %v1846 = vunpack.c.h.b16 %v1479
          %v1847 = vunpack.c.l.b16 %v1480
          %v1848 = vunpack.c.h.b16 %v1480
          %v1849 = vunpack.c.l.b16 %v1481
          %v1850 = vunpack.c.h.b16 %v1481
          %v1851 = vunpack.c.l.b16 %v1482
          %v1852 = vunpack.c.h.b16 %v1482
          %v1853 = vunpack.c.l.b16 %v1483
          %v1854 = vunpack.c.h.b16 %v1483
          %v1855 = vunpack.c.l.b16 %v1484
          %v1856 = vunpack.c.h.b16 %v1484
          %v1857 = vunpack.c.l.b16 %v1485
          %v1858 = vunpack.c.h.b16 %v1485
          %v1859 = vunpack.c.l.b16 %v1486
          %v1860 = vunpack.c.h.b16 %v1486
          %v1861 = vunpack.c.l.b16 %v1487
          %v1862 = vunpack.c.h.b16 %v1487
          %v1863 = vunpack.c.l.b16 %v1488
          %v1864 = vunpack.c.h.b16 %v1488
          %v1865 = vunpack.c.l.b16 %v1489
          %v1866 = vunpack.c.h.b16 %v1489
          %v1867 = vunpack.c.l.b16 %v1490
          %v1868 = vunpack.c.h.b16 %v1490
          %v1869 = vunpack.c.l.b16 %v1491
          %v1870 = vunpack.c.h.b16 %v1491
          %v1871 = vunpack.c.l.b16 %v1492
          %v1872 = vunpack.c.h.b16 %v1492
          %v1873 = vunpack.c.l.b16 %v1493
          %v1874 = vunpack.c.h.b16 %v1493
          %v1875 = vunpack.c.l.b16 %v1494
          %v1876 = vunpack.c.h.b16 %v1494
          %v1877 = vunpack.c.l.b16 %v1495
          %v1878 = vunpack.c.h.b16 %v1495
          %v1879 = vunpack.c.l.b16 %v1496
          %v1880 = vunpack.c.h.b16 %v1496
          %v1881 = vpack.c.b16 %v1633, %v1625
          %v1882 = vpack.c.b16 %v1634, %v1626
          %v1883 = vpack.c.b16 %v1635, %v1627
          %v1884 = vpack.c.b16 %v1636, %v1628
          %v1885 = vpack.c.b16 %v1637, %v1629
          %v1886 = vpack.c.b16 %v1638, %v1630
          %v1887 = vpack.c.b16 %v1639, %v1631
          %v1888 = vpack.c.b16 %v1640, %v1632
          %v1889 = vpack.c.b16 %v1649, %v1641
          %v1890 = vpack.c.b16 %v1650, %v1642
          %v1891 = vpack.c.b16 %v1651, %v1643
          %v1892 = vpack.c.b16 %v1652, %v1644
          %v1893 = vpack.c.b16 %v1653, %v1645
          %v1894 = vpack.c.b16 %v1654, %v1646
          %v1895 = vpack.c.b16 %v1655, %v1647
          %v1896 = vpack.c.b16 %v1656, %v1648
          %v1897 = vpack.c.b16 %v1665, %v1657
          %v1898 = vpack.c.b16 %v1666, %v1658
          %v1899 = vpack.c.b16 %v1667, %v1659
          %v1900 = vpack.c.b16 %v1668, %v1660
          %v1901 = vpack.c.b16 %v1669, %v1661
          %v1902 = vpack.c.b16 %v1670, %v1662
          %v1903 = vpack.c.b16 %v1671, %v1663
          %v1904 = vpack.c.b16 %v1672, %v1664
          %v1905 = vpack.c.b16 %v1681, %v1673
          %v1906 = vpack.c.b16 %v1682, %v1674
          %v1907 = vpack.c.b16 %v1683, %v1675
          %v1908 = vpack.c.b16 %v1684, %v1676
          %v1909 = vpack.c.b16 %v1685, %v1677
          %v1910 = vpack.c.b16 %v1686, %v1678
          %v1911 = vpack.c.b16 %v1687, %v1679
          %v1912 = vpack.c.b16 %v1688, %v1680
          %v1913 = vpack.c.b16 %v1697, %v1689
          %v1914 = vpack.c.b16 %v1698, %v1690
          %v1915 = vpack.c.b16 %v1699, %v1691
          %v1916 = vpack.c.b16 %v1700, %v1692
          %v1917 = vpack.c.b16 %v1701, %v1693
          %v1918 = vpack.c.b16 %v1702, %v1694
          %v1919 = vpack.c.b16 %v1703, %v1695
          %v1920 = vpack.c.b16 %v1704, %v1696
          %v1921 = vpack.c.b16 %v1713, %v1705
          %v1922 = vpack.c.b16 %v1714, %v1706
          %v1923 = vpack.c.b16 %v1715, %v1707
          %v1924 = vpack.c.b16 %v1716, %v1708
          %v1925 = vpack.c.b16 %v1717, %v1709
          %v1926 = vpack.c.b16 %v1718, %v1710
          %v1927 = vpack.c.b16 %v1719, %v1711
          %v1928 = vpack.c.b16 %v1720, %v1712
          %v1929 = vpack.c.b16 %v1729, %v1721
          %v1930 = vpack.c.b16 %v1730, %v1722
          %v1931 = vpack.c.b16 %v1731, %v1723
          %v1932 = vpack.c.b16 %v1732, %v1724
          %v1933 = vpack.c.b16 %v1733, %v1725
          %v1934 = vpack.c.b16 %v1734, %v1726
          %v1935 = vpack.c.b16 %v1735, %v1727
          %v1936 = vpack.c.b16 %v1736, %v1728
          %v1937 = vpack.c.b16 %v1745, %v1737
          %v1938 = vpack.c.b16 %v1746, %v1738
          %v1939 = vpack.c.b16 %v1747, %v1739
          %v1940 = vpack.c.b16 %v1748, %v1740
          %v1941 = vpack.c.b16 %v1749, %v1741
          %v1942 = vpack.c.b16 %v1750, %v1742
          %v1943 = vpack.c.b16 %v1751, %v1743
          %v1944 = vpack.c.b16 %v1752, %v1744
          %v1945 = vpack.c.b16 %v1761, %v1753
          %v1946 = vpack.c.b16 %v1762, %v1754
          %v1947 = vpack.c.b16 %v1763, %v1755
          %v1948 = vpack.c.b16 %v1764, %v1756
          %v1949 = vpack.c.b16 %v1765, %v1757
          %v1950 = vpack.c.b16 %v1766, %v1758
          %v1951 = vpack.c.b16 %v1767, %v1759
          %v1952 = vpack.c.b16 %v1768, %v1760
          %v1953 = vpack.c.b16 %v1777, %v1769
          %v1954 = vpack.c.b16 %v1778, %v1770
          %v1955 = vpack.c.b16 %v1779, %v1771
          %v1956 = vpack.c.b16 %v1780, %v1772
          %v1957 = vpack.c.b16 %v1781, %v1773
          %v1958 = vpack.c.b16 %v1782, %v1774
          %v1959 = vpack.c.b16 %v1783, %v1775
          %v1960 = vpack.c.b16 %v1784, %v1776
          %v1961 = vpack.c.b16 %v1793, %v1785
          %v1962 = vpack.c.b16 %v1794, %v1786
          %v1963 = vpack.c.b16 %v1795, %v1787
          %v1964 = vpack.c.b16 %v1796, %v1788
          %v1965 = vpack.c.b16 %v1797, %v1789
          %v1966 = vpack.c.b16 %v1798, %v1790
          %v1967 = vpack.c.b16 %v1799, %v1791
          %v1968 = vpack.c.b16 %v1800, %v1792
          %v1969 = vpack.c.b16 %v1809, %v1801
          %v1970 = vpack.c.b16 %v1810, %v1802
          %v1971 = vpack.c.b16 %v1811, %v1803
          %v1972 = vpack.c.b16 %v1812, %v1804
          %v1973 = vpack.c.b16 %v1813, %v1805
          %v1974 = vpack.c.b16 %v1814, %v1806
          %v1975 = vpack.c.b16 %v1815, %v1807
          %v1976 = vpack.c.b16 %v1816, %v1808
          %v1977 = vpack.c.b16 %v1825, %v1817
          %v1978 = vpack.c.b16 %v1826, %v1818
          %v1979 = vpack.c.b16 %v1827, %v1819
          %v1980 = vpack.c.b16 %v1828, %v1820
          %v1981 = vpack.c.b16 %v1829, %v1821
          %v1982 = vpack.c.b16 %v1830, %v1822
          %v1983 = vpack.c.b16 %v1831, %v1823
          %v1984 = vpack.c.b16 %v1832, %v1824
          %v1985 = vpack.c.b16 %v1841, %v1833
          %v1986 = vpack.c.b16 %v1842, %v1834
          %v1987 = vpack.c.b16 %v1843, %v1835
          %v1988 = vpack.c.b16 %v1844, %v1836
          %v1989 = vpack.c.b16 %v1845, %v1837
          %v1990 = vpack.c.b16 %v1846, %v1838
          %v1991 = vpack.c.b16 %v1847, %v1839
          %v1992 = vpack.c.b16 %v1848, %v1840
          %v1993 = vpack.c.b16 %v1857, %v1849
          %v1994 = vpack.c.b16 %v1858, %v1850
          %v1995 = vpack.c.b16 %v1859, %v1851
          %v1996 = vpack.c.b16 %v1860, %v1852
          %v1997 = vpack.c.b16 %v1861, %v1853
          %v1998 = vpack.c.b16 %v1862, %v1854
          %v1999 = vpack.c.b16 %v1863, %v1855
          %v2000 = vpack.c.b16 %v1864, %v1856
          %v2001 = vpack.c.b16 %v1873, %v1865
          %v2002 = vpack.c.b16 %v1874, %v1866
          %v2003 = vpack.c.b16 %v1875, %v1867
          %v2004 = vpack.c.b16 %v1876, %v1868
          %v2005 = vpack.c.b16 %v1877, %v1869
          %v2006 = vpack.c.b16 %v1878, %v1870
          %v2007 = vpack.c.b16 %v1879, %v1871
          %v2008 = vpack.c.b16 %v1880, %v1872
          %2137 = vmatprep.subr.bf16.mxu0 %v1882
          %2138 = vmatpush1.bf16.msra.mxu0 %v1881
          %2139 = vmatprep.subr.bf16.mxu0 %v1890
          %2140 = vmatpush1.bf16.msra.mxu0 %v1889
          %2141 = vmatprep.subr.bf16.mxu0 %v1898
          %2142 = vmatpush1.bf16.msra.mxu0 %v1897
          %2143 = vmatprep.subr.bf16.mxu0 %v1906
          %2144 = vmatpush1.bf16.msra.mxu0 %v1905
          %2145 = vmatprep.subr.bf16.mxu0 %v1914
          %2146 = vmatpush1.bf16.msra.mxu0 %v1913
          %2147 = vmatprep.subr.bf16.mxu0 %v1922
          %2148 = vmatpush1.bf16.msra.mxu0 %v1921
          %2149 = vmatprep.subr.bf16.mxu0 %v1930
          %2150 = vmatpush1.bf16.msra.mxu0 %v1929
          %2151 = vmatprep.subr.bf16.mxu0 %v1938
          %2152 = vmatpush1.bf16.msra.mxu0 %v1937
          %2153 = vmatprep.subr.bf16.mxu0 %v1946
          %2154 = vmatpush1.bf16.msra.mxu0 %v1945
          %2155 = vmatprep.subr.bf16.mxu0 %v1954
          %2156 = vmatpush1.bf16.msra.mxu0 %v1953
          %2157 = vmatprep.subr.bf16.mxu0 %v1962
          %2158 = vmatpush1.bf16.msra.mxu0 %v1961
          %2159 = vmatprep.subr.bf16.mxu0 %v1970
          %2160 = vmatpush1.bf16.msra.mxu0 %v1969
          %2161 = vmatprep.subr.bf16.mxu0 %v1978
          %2162 = vmatpush1.bf16.msra.mxu0 %v1977
          %2163 = vmatprep.subr.bf16.mxu0 %v1986
          %2164 = vmatpush1.bf16.msra.mxu0 %v1985
          %2165 = vmatprep.subr.bf16.mxu0 %v1994
          %2166 = vmatpush1.bf16.msra.mxu0 %v1993
          %2167 = vmatprep.subr.bf16.mxu0 %v2002
          %2168 = vmatpush1.bf16.msra.mxu0 %v2001
          %2169 = vmatprep.mubr.bf16.mxu0 %v1360
          %2170 = vmatmul.mubr.bf16.gmra.mrb[0].mxu0 %v1359
          %v2171 = vpop.f32.mrb[0].mxu0
          %v2172 = vadd.f32 0.0, %v2171
          %v2173 = vpop.f32.mrb[0].mxu0
          %v2174 = vadd.f32 0.0, %v2173
          %v2175 = vpop.f32.mrb[0].mxu0
          %v2176 = vpop.f32.mrb[0].mxu0
          %2177 = vdwg.mxu0
          %2178 = vmatprep.subr.bf16.mxu0 %v1884
          %2179 = vmatpush1.bf16.msra.mxu0 %v1883
          %2180 = vmatprep.subr.bf16.mxu0 %v1892
          %2181 = vmatpush1.bf16.msra.mxu0 %v1891
          %2182 = vmatprep.subr.bf16.mxu0 %v1900
          %2183 = vmatpush1.bf16.msra.mxu0 %v1899
          %2184 = vmatprep.subr.bf16.mxu0 %v1908
          %2185 = vmatpush1.bf16.msra.mxu0 %v1907
          %2186 = vmatprep.subr.bf16.mxu0 %v1916
          %2187 = vmatpush1.bf16.msra.mxu0 %v1915
          %2188 = vmatprep.subr.bf16.mxu0 %v1924
          %2189 = vmatpush1.bf16.msra.mxu0 %v1923
          %2190 = vmatprep.subr.bf16.mxu0 %v1932
          %2191 = vmatpush1.bf16.msra.mxu0 %v1931
          %2192 = vmatprep.subr.bf16.mxu0 %v1940
          %2193 = vmatpush1.bf16.msra.mxu0 %v1939
          %2194 = vmatprep.subr.bf16.mxu0 %v1948
          %2195 = vmatpush1.bf16.msra.mxu0 %v1947
          %2196 = vmatprep.subr.bf16.mxu0 %v1956
          %2197 = vmatpush1.bf16.msra.mxu0 %v1955
          %2198 = vmatprep.subr.bf16.mxu0 %v1964
          %2199 = vmatpush1.bf16.msra.mxu0 %v1963
          %2200 = vmatprep.subr.bf16.mxu0 %v1972
          %2201 = vmatpush1.bf16.msra.mxu0 %v1971
          %2202 = vmatprep.subr.bf16.mxu0 %v1980
          %2203 = vmatpush1.bf16.msra.mxu0 %v1979
          %2204 = vmatprep.subr.bf16.mxu0 %v1988
          %2205 = vmatpush1.bf16.msra.mxu0 %v1987
          %2206 = vmatprep.subr.bf16.mxu0 %v1996
          %2207 = vmatpush1.bf16.msra.mxu0 %v1995
          %2208 = vmatprep.subr.bf16.mxu0 %v2004
          %2209 = vmatpush1.bf16.msra.mxu0 %v2003
          %2210 = vmatprep.mubr.bf16.mxu0 %v1360
          %2211 = vmatmul.mubr.bf16.gmra.mrb[0].mxu0 %v1359
          %v2212 = vpop.f32.mrb[0].mxu0
          %v2213 = vadd.f32 0.0, %v2212
          %v2214 = vpop.f32.mrb[0].mxu0
          %v2215 = vadd.f32 0.0, %v2214
          %v2216 = vpop.f32.mrb[0].mxu0
          %v2217 = vpop.f32.mrb[0].mxu0
          %2218 = vdwg.mxu0
          %2219 = vmatprep.subr.bf16.mxu0 %v1886
          %2220 = vmatpush1.bf16.msra.mxu0 %v1885
          %2221 = vmatprep.subr.bf16.mxu0 %v1894
          %2222 = vmatpush1.bf16.msra.mxu0 %v1893
          %2223 = vmatprep.subr.bf16.mxu0 %v1902
          %2224 = vmatpush1.bf16.msra.mxu0 %v1901
          %2225 = vmatprep.subr.bf16.mxu0 %v1910
          %2226 = vmatpush1.bf16.msra.mxu0 %v1909
          %2227 = vmatprep.subr.bf16.mxu0 %v1918
          %2228 = vmatpush1.bf16.msra.mxu0 %v1917
          %2229 = vmatprep.subr.bf16.mxu0 %v1926
          %2230 = vmatpush1.bf16.msra.mxu0 %v1925
          %2231 = vmatprep.subr.bf16.mxu0 %v1934
          %2232 = vmatpush1.bf16.msra.mxu0 %v1933
          %2233 = vmatprep.subr.bf16.mxu0 %v1942
          %2234 = vmatpush1.bf16.msra.mxu0 %v1941
          %2235 = vmatprep.subr.bf16.mxu0 %v1950
          %2236 = vmatpush1.bf16.msra.mxu0 %v1949
          %2237 = vmatprep.subr.bf16.mxu0 %v1958
          %2238 = vmatpush1.bf16.msra.mxu0 %v1957
          %2239 = vmatprep.subr.bf16.mxu0 %v1966
          %2240 = vmatpush1.bf16.msra.mxu0 %v1965
          %2241 = vmatprep.subr.bf16.mxu0 %v1974
          %2242 = vmatpush1.bf16.msra.mxu0 %v1973
          %2243 = vmatprep.subr.bf16.mxu0 %v1982
          %2244 = vmatpush1.bf16.msra.mxu0 %v1981
          %2245 = vmatprep.subr.bf16.mxu0 %v1990
          %2246 = vmatpush1.bf16.msra.mxu0 %v1989
          %2247 = vmatprep.subr.bf16.mxu0 %v1998
          %2248 = vmatpush1.bf16.msra.mxu0 %v1997
          %2249 = vmatprep.subr.bf16.mxu0 %v2006
          %2250 = vmatpush1.bf16.msra.mxu0 %v2005
          %2251 = vmatprep.mubr.bf16.mxu0 %v1360
          %2252 = vmatmul.mubr.bf16.gmra.mrb[0].mxu0 %v1359
          %v2253 = vpop.f32.mrb[0].mxu0
          %v2254 = vadd.f32 0.0, %v2253
          %v2255 = vpop.f32.mrb[0].mxu0
          %v2256 = vadd.f32 0.0, %v2255
          %v2257 = vpop.f32.mrb[0].mxu0
          %v2258 = vpop.f32.mrb[0].mxu0
          %2259 = vdwg.mxu0
          %2260 = vmatprep.subr.bf16.mxu0 %v1888
          %2261 = vmatpush1.bf16.msra.mxu0 %v1887
          %2262 = vmatprep.subr.bf16.mxu0 %v1896
          %2263 = vmatpush1.bf16.msra.mxu0 %v1895
          %2264 = vmatprep.subr.bf16.mxu0 %v1904
          %2265 = vmatpush1.bf16.msra.mxu0 %v1903
          %2266 = vmatprep.subr.bf16.mxu0 %v1912
          %2267 = vmatpush1.bf16.msra.mxu0 %v1911
          %2268 = vmatprep.subr.bf16.mxu0 %v1920
          %2269 = vmatpush1.bf16.msra.mxu0 %v1919
          %2270 = vmatprep.subr.bf16.mxu0 %v1928
          %2271 = vmatpush1.bf16.msra.mxu0 %v1927
          %2272 = vmatprep.subr.bf16.mxu0 %v1936
          %2273 = vmatpush1.bf16.msra.mxu0 %v1935
          %2274 = vmatprep.subr.bf16.mxu0 %v1944
          %2275 = vmatpush1.bf16.msra.mxu0 %v1943
          %2276 = vmatprep.subr.bf16.mxu0 %v1952
          %2277 = vmatpush1.bf16.msra.mxu0 %v1951
          %2278 = vmatprep.subr.bf16.mxu0 %v1960
          %2279 = vmatpush1.bf16.msra.mxu0 %v1959
          %2280 = vmatprep.subr.bf16.mxu0 %v1968
          %2281 = vmatpush1.bf16.msra.mxu0 %v1967
          %2282 = vmatprep.subr.bf16.mxu0 %v1976
          %2283 = vmatpush1.bf16.msra.mxu0 %v1975
          %2284 = vmatprep.subr.bf16.mxu0 %v1984
          %2285 = vmatpush1.bf16.msra.mxu0 %v1983
          %2286 = vmatprep.subr.bf16.mxu0 %v1992
          %2287 = vmatpush1.bf16.msra.mxu0 %v1991
          %2288 = vmatprep.subr.bf16.mxu0 %v2000
          %2289 = vmatpush1.bf16.msra.mxu0 %v1999
          %2290 = vmatprep.subr.bf16.mxu0 %v2008
          %2291 = vmatpush1.bf16.msra.mxu0 %v2007
          %2292 = vmatprep.mubr.bf16.mxu0 %v1360
          %2293 = vmatmul.mubr.bf16.gmra.mrb[0].mxu0 %v1359
          %v2294 = vpop.f32.mrb[0].mxu0
          %v2295 = vadd.f32 0.0, %v2294
          %v2296 = vpop.f32.mrb[0].mxu0
          %v2297 = vadd.f32 0.0, %v2296
          %v2298 = vpop.f32.mrb[0].mxu0
          %v2299 = vpop.f32.mrb[0].mxu0
          %2300 = vdwg.mxu0
          %v2301 = vadd.f32 %v1361, %v2172
          %v2302 = vadd.f32 %v1362, %v2174
          %v2303 = vadd.f32 %v1363, %v2213
          %v2304 = vadd.f32 %v1364, %v2215
          %v2305 = vadd.f32 %v1365, %v2254
          %v2306 = vadd.f32 %v1366, %v2256
          %v2307 = vadd.f32 %v1367, %v2295
          %v2308 = vadd.f32 %v1368, %v2297
          %2309 = vst [vmem:[#allocation3] sm:$0xff] %v2301
          %2310 = vst [vmem:[#allocation3 + $0x8] sm:$0xff] %v2302
          %2311 = vst [vmem:[#allocation3 + $0x10] sm:$0xff] %v2303
          %2312 = vst [vmem:[#allocation3 + $0x18] sm:$0xff] %v2304
          %2313 = vst [vmem:[#allocation3 + $0x20] sm:$0xff] %v2305
          %2314 = vst [vmem:[#allocation3 + $0x28] sm:$0xff] %v2306
          %2315 = vst [vmem:[#allocation3 + $0x30] sm:$0xff] %v2307
          %2316 = vst [vmem:[#allocation3 + $0x38] sm:$0xff] %v2308
          // Predicated region
          $region69: #{tpu_custom_call.1} parent=67 // pred_check
            %p2317 = pneg %p365
          $region70: #{tpu_custom_call.1} parent=67 // pred_check_branch
            %2319 = sbr.rel (%p2317) target = $region72
          $region71: #{tpu_custom_call.1} parent=67 // pred_region
            %v2320 = vld [vmem:[#allocation3] sm:$0xff]
            %v2321 = vld [vmem:[#allocation3 + $0x8] sm:$0xff]
            %v2322 = vld [vmem:[#allocation3 + $0x10] sm:$0xff]
            %v2323 = vld [vmem:[#allocation3 + $0x18] sm:$0xff]
            %v2324 = vld [vmem:[#allocation3 + $0x20] sm:$0xff]
            %v2325 = vld [vmem:[#allocation3 + $0x28] sm:$0xff]
            %v2326 = vld [vmem:[#allocation3 + $0x30] sm:$0xff]
            %v2327 = vld [vmem:[#allocation3 + $0x38] sm:$0xff]
            %v2328 = vld [vmem:[%s4] sm:$0xff]
            %v2330 = vlaneseq
            %v2331 = vshrl.u32 %v2330, 7
            %v2332 = vsub.s32 0, %v2331
            %v2333 = vrot.slane %v2328, %v2332
            %v2334 = vlaneseq
            %v2335 = vshrl.u32 %v2334, 7
            %v2336 = vsub.s32 1, %v2335
            %v2337 = vrot.slane %v2328, %v2336
            %v2338 = vlaneseq
            %v2339 = vshrl.u32 %v2338, 7
            %v2340 = vsub.s32 2, %v2339
            %v2341 = vrot.slane %v2328, %v2340
            %v2342 = vlaneseq
            %v2343 = vshrl.u32 %v2342, 7
            %v2344 = vsub.s32 3, %v2343
            %v2345 = vrot.slane %v2328, %v2344
            %v2346 = vlaneseq
            %v2347 = vshrl.u32 %v2346, 7
            %v2348 = vsub.s32 4, %v2347
            %v2349 = vrot.slane %v2328, %v2348
            %v2350 = vlaneseq
            %v2351 = vshrl.u32 %v2350, 7
            %v2352 = vsub.s32 5, %v2351
            %v2353 = vrot.slane %v2328, %v2352
            %v2354 = vlaneseq
            %v2355 = vshrl.u32 %v2354, 7
            %v2356 = vsub.s32 6, %v2355
            %v2357 = vrot.slane %v2328, %v2356
            %v2358 = vlaneseq
            %v2359 = vshrl.u32 %v2358, 7
            %v2360 = vsub.s32 7, %v2359
            %v2361 = vrot.slane %v2328, %v2360
            %v2370 = vadd.f32 %v2320, %v2333
            %v2371 = vadd.f32 %v2321, %v2337
            %v2372 = vadd.f32 %v2322, %v2341
            %v2373 = vadd.f32 %v2323, %v2345
            %v2374 = vadd.f32 %v2324, %v2349
            %v2375 = vadd.f32 %v2325, %v2353
            %v2376 = vadd.f32 %v2326, %v2357
            %v2377 = vadd.f32 %v2327, %v2361
            %2378 = vst [vmem:[%s353] sm:$0xff] %v2370
            %2379 = vst [vmem:[%s353 + $0x8] sm:$0xff] %v2371
            %2380 = vst [vmem:[%s353 + $0x10] sm:$0xff] %v2372
            %2381 = vst [vmem:[%s353 + $0x18] sm:$0xff] %v2373
            %2382 = vst [vmem:[%s353 + $0x20] sm:$0xff] %v2374
            %2383 = vst [vmem:[%s353 + $0x28] sm:$0xff] %v2375
            %2384 = vst [vmem:[%s353 + $0x30] sm:$0xff] %v2376
            %2385 = vst [vmem:[%s353 + $0x38] sm:$0xff] %v2377
          $region72: #{tpu_custom_call.1} parent=67 // pred_fallthru
            _
        $region68: #{tpu_custom_call.1} parent=39 // pred_fallthru
          _
        %s2386 = sand.u32 %s181, 1
        %s2387 = scalar_lea.sflag [#allocation6], %s2386
        %s2388 = sand.u32 %s181, 1
        %s2389 = smul.addr %s2388, 64
        %s2390 = scalar_lea.vmem [#allocation11], %s2389
        // Predicated region
        $region73: #{tpu_custom_call.1} parent=39 // pred_check
          %p2391 = pneg %p191
        $region74: #{tpu_custom_call.1} parent=39 // pred_check_branch
          %2393 = sbr.rel (%p2391) target = $region76
        $region75: #{tpu_custom_call.1} parent=39 // pred_region
          %s2395 = ssub.s32 1024, 1024
          %2396 = vsyncadd %s2387, %s2395
          %s2397 = smul.addr %s28, 8
          %s2398 = smul.addr %s2397, 128
          %s2399 = scalar_lea.hbm %s5, %s2398
          %s2401 = sshll.u32 %s2390, 4
          %s2402 = int_to_ptr.vmem [resolvable:$true] %s2401
          %2404 = dma.vmem_to_hbm [thread:$0]  %s2402, 1024, %s2399, %s2387
        $region76: #{tpu_custom_call.1} parent=39 // pred_fallthru
          _
      $region40: #{tpu_custom_call.1} parent=5 // pred_fallthru
        _
      %p2405 = scmp.le.s32.totalorder 2, %s18
      // Predicated region
      $region77: #{tpu_custom_call.1} parent=5 // pred_check
        %p2406 = pneg %p2405
      $region78: #{tpu_custom_call.1} parent=5 // pred_check_branch
        %2408 = sbr.rel (%p2406) target = $region80
      $region79: #{tpu_custom_call.1} parent=5 // pred_region
        %s2409 = ssub.s32 %s18, 2
        // Predicated region
        $region81: #{tpu_custom_call.1} parent=79 // pred_check
          %p2410 = pneg %p197
        $region82: #{tpu_custom_call.1} parent=79 // pred_check_branch
          %2412 = sbr.rel (%p2410) target = $region84
        $region83: #{tpu_custom_call.1} parent=79 // pred_region
          %s2413 = sand.u32 %s182, 1
          %s2414 = scalar_lea.sflag [#allocation6], %s2413
          %s2415 = sand.u32 %s182, 1
          %s2416 = smul.addr %s2415, 64
          %s2417 = scalar_lea.vmem [#allocation11], %s2416
          %2418 = dma.done %s2414, 1024
        $region84: #{tpu_custom_call.1} parent=79 // pred_fallthru
          _
      $region80: #{tpu_custom_call.1} parent=5 // pred_fallthru
        _
    $region6: #{tpu_custom_call.1} parent=1 // loop_footer
      %s22 = sadd.s32 1, %s18
    $region7: #{tpu_custom_call.1} parent=1 // loop_footer_branch
      %17 = sbr.rel target = $region3
    $region8: #{tpu_custom_call.1} parent=1 // loop_exit
      _
    %2419 = vsyncpa [#allocation5], 1
    %s2420 = scalar_lea.sflag [#allocation5], 1
    %2421 = vsyncpa %s2420, 1
    %2422 = vsyncpa [#allocation8], 1
    %2423 = vsyncpa [#allocation6], 1
    %s2424 = scalar_lea.sflag [#allocation6], 1
    %2425 = vsyncpa %s2424, 1

</llo_original>
